<compile_context>
chip_gen: v7x
topology: tpu7x:2x2x1
jax: 0.10.0
libtpu: 0.0.40
codegen_flags: <defaults>
</compile_context>

<pallas_src>
import math
import functools

import jax
import jax.numpy as jnp
from jax import lax
from jax.experimental import pallas as pl
from jax.experimental.pallas import tpu as pltpu


# ---------------------------------------------------------------------------
# Helpers
# ---------------------------------------------------------------------------
def _round_up(n, m):
    return ((n + m - 1) // m) * m


def _largest_divisor_leq(n, cap):
    for c in range(min(n, max(int(cap), 1)), 0, -1):
        if n % c == 0:
            return c
    return 1


def _vmem_capacity_bytes():
    """Physical VMEM of the current chip; conservative fallback if unknown."""
    try:
        cap = int(pltpu.get_tpu_info().vmem_capacity_bytes)
        if cap > 0:
            return cap
    except Exception:
        pass
    return 64 << 20  # v7x per-core physical VMEM (smallest of the targets)


# ---------------------------------------------------------------------------
# Fused kernel: input projection GEMM + LSTM recurrence for one
# (batch-block, time-block) grid step.
# ---------------------------------------------------------------------------
def _lstm_fused_kernel(x_ref, wih_ref, whh_ref, b_ref, h0_ref, c0_ref,
                       out_ref, cn_ref,
                       gx_sc, h_sc, c_sc,
                       *, hidden_dim, steps, unroll):
    """
    grid = (nb, nt): batch blocks ("parallel") x time blocks ("arbitrary").

    x_ref  : (Tc, Bc, D)    input slab for these time steps / this batch block
    wih_ref: (D, 4H)        input->gates weight (pre-transposed, gate-padded)
    whh_ref: (H, 4H)        hidden->gates weight (pre-transposed, gate-padded)
    b_ref  : (1, 4H)        b_ih + b_hh (gate-padded)
    h0_ref : (Bc, H)        initial hidden state for this batch block
    c0_ref : (Bc, H)        initial cell state  for this batch block
    out_ref: (Tc, Bc, H)    per-step outputs h_t
    cn_ref : (Bc, H)        final cell state (written on the last time block)
    gx_sc  : (Tc, Bc, 4H)   VMEM scratch holding the fused input projection
    h_sc, c_sc : (Bc, H)    f32 VMEM scratch carrying the recurrent state
    """
    t = pl.program_id(1)

    @pl.when(t == 0)
    def _():
        h_sc[...] = h0_ref[...]
        c_sc[...] = c0_ref[...]

    H = hidden_dim
    Tc, Bc, D = x_ref.shape

    # Fused input projection: one MXU-friendly (Tc*Bc, D) x (D, 4H) GEMM per
    # block, written to VMEM scratch -> gx never touches HBM.
    x2d = x_ref[...].reshape(Tc * Bc, D)
    gx = jnp.dot(x2d, wih_ref[...], preferred_element_type=jnp.float32) + b_ref[...]
    gx_sc[...] = gx.reshape(Tc, Bc, 4 * H)

    whh = whh_ref[...]  # (H, 4H), f32, resident across the time loop

    def _sig(v):
        # Exact identity sigmoid(x) = 0.5*(1 + tanh(0.5*x)): 1 EUP push/gate.
        return 0.5 * (jnp.tanh(0.5 * v) + 1.0)

    def step(s, carry):
        h, c = carry
        # Only the recurrent matmul sits on the serial chain.
        gates = gx_sc[s] + jnp.dot(h, whh, preferred_element_type=jnp.float32)
        i_g = _sig(gates[:, 0 * H:1 * H])
        f_g = _sig(gates[:, 1 * H:2 * H])
        g_g = jnp.tanh(gates[:, 2 * H:3 * H])
        o_g = _sig(gates[:, 3 * H:4 * H])
        c_new = f_g * c + i_g * g_g
        h_new = o_g * jnp.tanh(c_new)
        out_ref[s] = h_new.astype(out_ref.dtype)
        return h_new, c_new

    h_fin, c_fin = lax.fori_loop(0, steps, step, (h_sc[...], c_sc[...]),
                                 unroll=unroll)
    h_sc[...] = h_fin
    c_sc[...] = c_fin

    @pl.when(t == pl.num_programs(1) - 1)
    def _():
        cn_ref[...] = c_fin.astype(cn_ref.dtype)


# ---------------------------------------------------------------------------
# Wrapper: Encoder.forward(x, hidden)
# ---------------------------------------------------------------------------
def encoder_forward(x, hidden, params):
    """
    x      : (T, B, D) float32
    hidden : (h0, c0) each (1, B, H) float32
    params : dict with 'w_ih' (4H, D), 'w_hh' (4H, H), 'b_ih' (4H,), 'b_hh' (4H,)
    returns (output, (h_n, c_n)) with output (T, B, H), h_n/c_n (1, B, H)
    """
    h0, c0 = hidden
    T, B, D = x.shape
    H = params["w_hh"].shape[1]

    # ---- lane-dense gate layout: pad each gate's H up to a multiple of 128.
    # Zero padding is numerically inert (padded gates are exactly 0, padded
    # h/c stay exactly 0 and never contaminate the real hidden dims).
    Hp = _round_up(H, 128)
    ph = Hp - H

    def pad_gate_rows(w):
        # (4H, ...) -> (4Hp, ...), zero-padding inside each of the 4 gate blocks.
        w4 = w.reshape(4, H, *w.shape[1:])
        pad = [(0, 0), (0, ph)] + [(0, 0)] * (w.ndim - 1)
        return jnp.pad(w4, pad).reshape(4 * Hp, *w.shape[1:])

    w_ih_p = pad_gate_rows(params["w_ih"].astype(jnp.float32))            # (4Hp, D)
    w_hh_p = jnp.pad(pad_gate_rows(params["w_hh"].astype(jnp.float32)),
                     ((0, 0), (0, ph)))                                   # (4Hp, Hp)
    bias_p = pad_gate_rows(
        (params["b_ih"] + params["b_hh"]).astype(jnp.float32)).reshape(1, 4 * Hp)

    w_ih_t = jnp.transpose(w_ih_p)   # (D, 4Hp)
    w_hh_t = jnp.transpose(w_hh_p)   # (Hp, 4Hp)

    # ---- batch padding (f32 sublane = 8) and batch-parallel blocking. ------
    B_pad = max(8, _round_up(B, 8))
    pb = B_pad - B
    # 2 batch blocks when possible: v7x's two TensorCores each take one half
    # (axis marked "parallel"); near-free on single-TC v5e/v6e.
    nb = 2 if (B_pad % 16 == 0) else 1
    Bc = B_pad // nb

    x_pad = jnp.pad(x.astype(jnp.float32), ((0, 0), (0, pb), (0, 0)))
    h0_pad = jnp.pad(h0.reshape(B, H).astype(jnp.float32), ((0, pb), (0, ph)))
    c0_pad = jnp.pad(c0.reshape(B, H).astype(jnp.float32), ((0, pb), (0, ph)))

    # ---- derive Tc and vmem_limit from the actual device VMEM capacity. ----
    f32 = 4
    vmem_cap = _vmem_capacity_bytes()
    budget = int(0.70 * vmem_cap)

    # Single-buffered constant blocks + state scratch:
    fixed = f32 * (D * 4 * Hp          # W_ih^T
                   + Hp * 4 * Hp       # W_hh^T
                   + 8 * 4 * Hp        # bias (sublane-padded)
                   + 5 * Bc * Hp)      # h0, c0, c_n blocks + h/c scratch
    # Per-time-step costs (x/out stream -> double-buffered; gx scratch single):
    per_t = f32 * (2 * Bc * D + 2 * Bc * Hp + 4 * Bc * Hp)

    tc_cap = (budget - fixed) // per_t if budget > fixed else 1
    Tc = _largest_divisor_leq(T, min(max(tc_cap, 1), 64))
    nt = T // Tc

    footprint = fixed + per_t * Tc
    vmem_limit = int(min(max(footprint + (2 << 20), 8 << 20),
                         int(0.9 * vmem_cap)))

    # Cap the unroll factor so live (Bc, 4Hp) gate tensors don't spill vregs.
    gates_bytes = f32 * Bc * 4 * Hp
    if gates_bytes <= (16 << 10):
        unroll = min(Tc, 8)
    elif gates_bytes <= (64 << 10):
        unroll = min(Tc, 4)
    else:
        unroll = min(Tc, 2)

    kernel = functools.partial(_lstm_fused_kernel, hidden_dim=Hp,
                               steps=Tc, unroll=unroll)

    out_pad, cn_pad = pl.pallas_call(
        kernel,
        out_shape=(
            jax.ShapeDtypeStruct((T, B_pad, Hp), x.dtype),
            jax.ShapeDtypeStruct((B_pad, Hp), x.dtype),
        ),
        grid_spec=pltpu.PrefetchScalarGridSpec(
            num_scalar_prefetch=0,
            grid=(nb, nt),
            in_specs=[
                pl.BlockSpec((Tc, Bc, D), lambda b, t: (t, b, 0)),     # x
                pl.BlockSpec((D, 4 * Hp), lambda b, t: (0, 0)),        # W_ih^T
                pl.BlockSpec((Hp, 4 * Hp), lambda b, t: (0, 0)),       # W_hh^T
                pl.BlockSpec((1, 4 * Hp), lambda b, t: (0, 0)),        # bias
                pl.BlockSpec((Bc, Hp), lambda b, t: (b, 0)),           # h0
                pl.BlockSpec((Bc, Hp), lambda b, t: (b, 0)),           # c0
            ],
            out_specs=[
                pl.BlockSpec((Tc, Bc, Hp), lambda b, t: (t, b, 0)),    # output
                pl.BlockSpec((Bc, Hp), lambda b, t: (b, 0)),           # c_n
            ],
            scratch_shapes=[
                pltpu.VMEM((Tc, Bc, 4 * Hp), jnp.float32),   # fused gx block
                pltpu.VMEM((Bc, Hp), jnp.float32),           # h carry
                pltpu.VMEM((Bc, Hp), jnp.float32),           # c carry
            ],
        ),
        compiler_params=pltpu.CompilerParams(
            dimension_semantics=("parallel", "arbitrary"),
            vmem_limit_bytes=vmem_limit,
        ),
    )(x_pad, w_ih_t, w_hh_t, bias_p, h0_pad, c0_pad)

    out = out_pad[:, :B, :H]
    c_n = cn_pad[:B, :H].reshape(1, B, H)
    h_n = out[-1].reshape(1, B, H)   # single-layer LSTM: h_n == out[T-1]
    return out, (h_n, c_n)


# ---------------------------------------------------------------------------
# Parameter init mirroring nn.LSTM / Encoder.__init__
# ---------------------------------------------------------------------------
def init_encoder_params(key, input_dim, hidden_dim):
    std = 1.0 / math.sqrt(hidden_dim)
    k = jax.random.split(key, 6)
    params = {
        "w_ih": jax.random.uniform(k[0], (4 * hidden_dim, input_dim),
                                   jnp.float32, -std, std),
        "w_hh": jax.random.uniform(k[1], (4 * hidden_dim, hidden_dim),
                                   jnp.float32, -std, std),
        "b_ih": jax.random.uniform(k[2], (4 * hidden_dim,), jnp.float32, -std, std),
        "b_hh": jax.random.uniform(k[3], (4 * hidden_dim,), jnp.float32, -std, std),
        # Trainable initial states from Encoder.init_hidden (kept for parity;
        # forward uses the explicitly-passed hidden, same as the PyTorch module).
        "init_hx": jax.random.uniform(k[4], (hidden_dim,), jnp.float32, -std, std),
        "init_cx": jax.random.uniform(k[5], (hidden_dim,), jnp.float32, -std, std),
    }
    return params


def _lstm_reference(x, h0, c0, params):
    """Pure-JAX reference of the same LSTM for a sanity check."""
    w_ih, w_hh = params["w_ih"], params["w_hh"]
    b = params["b_ih"] + params["b_hh"]
    H = w_hh.shape[1]

    def step(carry, x_t):
        h, c = carry
        gates = x_t @ w_ih.T + h @ w_hh.T + b
        i = jax.nn.sigmoid(gates[:, 0 * H:1 * H])
        f = jax.nn.sigmoid(gates[:, 1 * H:2 * H])
        g = jnp.tanh(gates[:, 2 * H:3 * H])
        o = jax.nn.sigmoid(gates[:, 3 * H:4 * H])
        c_new = f * c + i * g
        h_new = o * jnp.tanh(c_new)
        return (h_new, c_new), h_new

    (h_n, c_n), out = jax.lax.scan(step, (h0[0], c0[0]), x)
    return out, (h_n[None], c_n[None])


if __name__ == "__main__":
    SEQ, BATCH, INPUT_DIM, HIDDEN_DIM = 8, 2, 4, 32

    key = jax.random.PRNGKey(0)
    k_param, k_x, k_h, k_c = jax.random.split(key, 4)

    params = init_encoder_params(k_param, INPUT_DIM, HIDDEN_DIM)

    x = jax.random.normal(k_x, (SEQ, BATCH, INPUT_DIM), jnp.float32)
    h0 = jax.random.normal(k_h, (1, BATCH, HIDDEN_DIM), jnp.float32) * 0.1
    c0 = jax.random.normal(k_c, (1, BATCH, HIDDEN_DIM), jnp.float32) * 0.1

    out, (h_n, c_n) = encoder_forward(x, (h0, c0), params)
    out = jax.block_until_ready(out)
    h_n = jax.block_until_ready(h_n)
    c_n = jax.block_until_ready(c_n)

    # Sanity check against a pure-JAX reference of the same recurrence.
    ref_out, (ref_h, ref_c) = _lstm_reference(x, h0, c0, params)
    assert out.shape == (SEQ, BATCH, HIDDEN_DIM)
    assert h_n.shape == (1, BATCH, HIDDEN_DIM)
    assert c_n.shape == (1, BATCH, HIDDEN_DIM)
    assert jnp.allclose(out, ref_out, atol=1e-5, rtol=1e-5)
    assert jnp.allclose(h_n, ref_h, atol=1e-5, rtol=1e-5)
    assert jnp.allclose(c_n, ref_c, atol=1e-5, rtol=1e-5)

    print("KERNEL_OK")
</pallas_src>

<mosaic_0001>
module attributes {stable_mosaic.version = 11 : i64} {
  func.func @_lstm_fused_kernel(%arg0: i32, %arg1: i32, %arg2: memref<8x8x4xf32, #tpu.memory_space<vmem>>, %arg3: memref<4x512xf32, #tpu.memory_space<vmem>>, %arg4: memref<128x512xf32, #tpu.memory_space<vmem>>, %arg5: memref<1x512xf32, #tpu.memory_space<vmem>>, %arg6: memref<8x128xf32, #tpu.memory_space<vmem>>, %arg7: memref<8x128xf32, #tpu.memory_space<vmem>>, %arg8: memref<8x8x128xf32, #tpu.memory_space<vmem>>, %arg9: memref<8x128xf32, #tpu.memory_space<vmem>>, %arg10: memref<8x8x512xf32, #tpu.memory_space<vmem>>, %arg11: memref<8x128xf32, #tpu.memory_space<vmem>>, %arg12: memref<8x128xf32, #tpu.memory_space<vmem>>) attributes {dimension_semantics = [#tpu.dimension_semantics<parallel>, #tpu.dimension_semantics<arbitrary>], iteration_bounds = array<i64: 1, 1>, scalar_prefetch = 0 : i64, scratch_operands = 3 : i64, tpu.core_type = #tpu.core_type<tc>, window_params = [{transform_indices = @transform_0, window_bounds = array<i64: 8, 8, 4>}, {pipeline_mode = #tpu.pipeline_mode<synchronous>, transform_indices = @transform_1, window_bounds = array<i64: 4, 512>}, {pipeline_mode = #tpu.pipeline_mode<synchronous>, transform_indices = @transform_2, window_bounds = array<i64: 128, 512>}, {pipeline_mode = #tpu.pipeline_mode<synchronous>, transform_indices = @transform_3, window_bounds = array<i64: 1, 512>}, {transform_indices = @transform_4, window_bounds = array<i64: 8, 128>}, {transform_indices = @transform_5, window_bounds = array<i64: 8, 128>}, {transform_indices = @transform_6, window_bounds = array<i64: 8, 8, 128>}, {transform_indices = @transform_7, window_bounds = array<i64: 8, 128>}]} {
    %c0_i32 = arith.constant 0 : i32
    %0 = arith.cmpi eq, %arg1, %c0_i32 : i32
    %1 = arith.extui %0 : i1 to i32
    %c0_i32_0 = arith.constant 0 : i32
    %2 = arith.cmpi ne, %1, %c0_i32_0 : i32
    scf.if %2 {
      %c0_135 = arith.constant 0 : index
      %c0_136 = arith.constant 0 : index
      %340 = vector.load %arg6[%c0_135, %c0_136] : memref<8x128xf32, #tpu.memory_space<vmem>>, vector<8x128xf32>
      %c0_137 = arith.constant 0 : index
      %c0_138 = arith.constant 0 : index
      %341 = vector.load %arg11[%c0_137, %c0_138] : memref<8x128xf32, #tpu.memory_space<vmem>>, vector<8x128xf32>
      tpu.vector_store %arg11[%c0_137, %c0_138], %340 {strides = array<i32>} : memref<8x128xf32, #tpu.memory_space<vmem>>, vector<8x128xf32>,
      %c0_139 = arith.constant 0 : index
      %c0_140 = arith.constant 0 : index
      %342 = vector.load %arg7[%c0_139, %c0_140] : memref<8x128xf32, #tpu.memory_space<vmem>>, vector<8x128xf32>
      %c0_141 = arith.constant 0 : index
      %c0_142 = arith.constant 0 : index
      %343 = vector.load %arg12[%c0_141, %c0_142] : memref<8x128xf32, #tpu.memory_space<vmem>>, vector<8x128xf32>
      tpu.vector_store %arg12[%c0_141, %c0_142], %342 {strides = array<i32>} : memref<8x128xf32, #tpu.memory_space<vmem>>, vector<8x128xf32>,
    } else {
    }
    %c0 = arith.constant 0 : index
    %c0_1 = arith.constant 0 : index
    %c0_2 = arith.constant 0 : index
    %3 = vector.load %arg2[%c0, %c0_1, %c0_2] : memref<8x8x4xf32, #tpu.memory_space<vmem>>, vector<8x8x4xf32>
    %4 = vector.shape_cast %3 : vector<8x8x4xf32> to vector<64x4xf32>
    %c0_3 = arith.constant 0 : index
    %c0_4 = arith.constant 0 : index
    %5 = vector.load %arg3[%c0_3, %c0_4] : memref<4x512xf32, #tpu.memory_space<vmem>>, vector<4x512xf32>
    %cst = arith.constant dense<0.000000e+00> : vector<64x512xf32>
    %6 = tpu.matmul %4, %5, %cst {dimension_numbers = #tpu.dot_dimension_numbers<[1], [0], [0], [1], [0, 0, 1, 1], [], []>} : vector<64x4xf32>, vector<4x512xf32>, vector<64x512xf32> -> vector<64x512xf32>
    %c0_5 = arith.constant 0 : index
    %c0_6 = arith.constant 0 : index
    %7 = vector.load %arg5[%c0_5, %c0_6] : memref<1x512xf32, #tpu.memory_space<vmem>>, vector<1x512xf32>
    %8 = vector.broadcast %7 : vector<1x512xf32> to vector<64x512xf32>
    %9 = arith.addf %6, %8 : vector<64x512xf32>
    %10 = vector.shape_cast %9 : vector<64x512xf32> to vector<8x8x512xf32>
    %c0_7 = arith.constant 0 : index
    %c0_8 = arith.constant 0 : index
    %c0_9 = arith.constant 0 : index
    %11 = vector.load %arg10[%c0_7, %c0_8, %c0_9] : memref<8x8x512xf32, #tpu.memory_space<vmem>>, vector<8x8x512xf32>
    tpu.vector_store %arg10[%c0_7, %c0_8, %c0_9], %10 {strides = array<i32>} : memref<8x8x512xf32, #tpu.memory_space<vmem>>, vector<8x8x512xf32>,
    %c0_10 = arith.constant 0 : index
    %c0_11 = arith.constant 0 : index
    %12 = vector.load %arg4[%c0_10, %c0_11] : memref<128x512xf32, #tpu.memory_space<vmem>>, vector<128x512xf32>
    %c0_12 = arith.constant 0 : index
    %c0_13 = arith.constant 0 : index
    %13 = vector.load %arg11[%c0_12, %c0_13] : memref<8x128xf32, #tpu.memory_space<vmem>>, vector<8x128xf32>
    %c0_14 = arith.constant 0 : index
    %c0_15 = arith.constant 0 : index
    %14 = vector.load %arg12[%c0_14, %c0_15] : memref<8x128xf32, #tpu.memory_space<vmem>>, vector<8x128xf32>
    %c0_i32_16 = arith.constant 0 : i32
    %15 = arith.index_cast %c0_i32_16 : i32 to index
    %c0_17 = arith.constant 0 : index
    %c0_18 = arith.constant 0 : index
    %16 = vector.load %arg10[%15, %c0_17, %c0_18] : memref<8x8x512xf32, #tpu.memory_space<vmem>>, vector<1x8x512xf32>
    %17 = vector.shape_cast %16 : vector<1x8x512xf32> to vector<8x512xf32>
    %cst_19 = arith.constant dense<0.000000e+00> : vector<8x512xf32>
    %18 = tpu.matmul %13, %12, %cst_19 {dimension_numbers = #tpu.dot_dimension_numbers<[1], [0], [0], [1], [0, 0, 1, 1], [], []>} : vector<8x128xf32>, vector<128x512xf32>, vector<8x512xf32> -> vector<8x512xf32>
    %19 = arith.addf %17, %18 : vector<8x512xf32>
    %20 = vector.extract_strided_slice %19 {offsets = [0, 0], sizes = [8, 128], strides = [1, 1]} : vector<8x512xf32> to vector<8x128xf32>
    %cst_20 = arith.constant 5.000000e-01 : f32
    %21 = vector.broadcast %cst_20 : f32 to vector<8x128xf32>
    %22 = arith.mulf %21, %20 : vector<8x128xf32>
    %23 = math.tanh %22 : vector<8x128xf32>
    %cst_21 = arith.constant 1.000000e+00 : f32
    %24 = vector.broadcast %cst_21 : f32 to vector<8x128xf32>
    %25 = arith.addf %23, %24 : vector<8x128xf32>
    %cst_22 = arith.constant 5.000000e-01 : f32
    %26 = vector.broadcast %cst_22 : f32 to vector<8x128xf32>
    %27 = arith.mulf %26, %25 : vector<8x128xf32>
    %28 = vector.extract_strided_slice %19 {offsets = [0, 128], sizes = [8, 128], strides = [1, 1]} : vector<8x512xf32> to vector<8x128xf32>
    %cst_23 = arith.constant 5.000000e-01 : f32
    %29 = vector.broadcast %cst_23 : f32 to vector<8x128xf32>
    %30 = arith.mulf %29, %28 : vector<8x128xf32>
    %31 = math.tanh %30 : vector<8x128xf32>
    %cst_24 = arith.constant 1.000000e+00 : f32
    %32 = vector.broadcast %cst_24 : f32 to vector<8x128xf32>
    %33 = arith.addf %31, %32 : vector<8x128xf32>
    %cst_25 = arith.constant 5.000000e-01 : f32
    %34 = vector.broadcast %cst_25 : f32 to vector<8x128xf32>
    %35 = arith.mulf %34, %33 : vector<8x128xf32>
    %36 = vector.extract_strided_slice %19 {offsets = [0, 256], sizes = [8, 128], strides = [1, 1]} : vector<8x512xf32> to vector<8x128xf32>
    %37 = math.tanh %36 : vector<8x128xf32>
    %38 = vector.extract_strided_slice %19 {offsets = [0, 384], sizes = [8, 128], strides = [1, 1]} : vector<8x512xf32> to vector<8x128xf32>
    %cst_26 = arith.constant 5.000000e-01 : f32
    %39 = vector.broadcast %cst_26 : f32 to vector<8x128xf32>
    %40 = arith.mulf %39, %38 : vector<8x128xf32>
    %41 = math.tanh %40 : vector<8x128xf32>
    %cst_27 = arith.constant 1.000000e+00 : f32
    %42 = vector.broadcast %cst_27 : f32 to vector<8x128xf32>
    %43 = arith.addf %41, %42 : vector<8x128xf32>
    %cst_28 = arith.constant 5.000000e-01 : f32
    %44 = vector.broadcast %cst_28 : f32 to vector<8x128xf32>
    %45 = arith.mulf %44, %43 : vector<8x128xf32>
    %46 = arith.mulf %35, %14 : vector<8x128xf32>
    %47 = arith.mulf %27, %37 : vector<8x128xf32>
    %48 = arith.addf %46, %47 : vector<8x128xf32>
    %49 = math.tanh %48 : vector<8x128xf32>
    %50 = arith.mulf %45, %49 : vector<8x128xf32>
    %51 = arith.index_cast %c0_i32_16 : i32 to index
    %c0_29 = arith.constant 0 : index
    %c0_30 = arith.constant 0 : index
    %52 = vector.load %arg8[%51, %c0_29, %c0_30] : memref<8x8x128xf32, #tpu.memory_space<vmem>>, vector<1x8x128xf32>
    %53 = vector.shape_cast %52 : vector<1x8x128xf32> to vector<8x128xf32>
    %54 = vector.shape_cast %50 : vector<8x128xf32> to vector<1x8x128xf32>
    tpu.vector_store %arg8[%51, %c0_29, %c0_30], %54 {strides = array<i32>} : memref<8x8x128xf32, #tpu.memory_space<vmem>>, vector<1x8x128xf32>,
    %c1_i32 = arith.constant 1 : i32
    %55 = arith.index_cast %c1_i32 : i32 to index
    %c0_31 = arith.constant 0 : index
    %c0_32 = arith.constant 0 : index
    %56 = vector.load %arg10[%55, %c0_31, %c0_32] : memref<8x8x512xf32, #tpu.memory_space<vmem>>, vector<1x8x512xf32>
    %57 = vector.shape_cast %56 : vector<1x8x512xf32> to vector<8x512xf32>
    %cst_33 = arith.constant dense<0.000000e+00> : vector<8x512xf32>
    %58 = tpu.matmul %50, %12, %cst_33 {dimension_numbers = #tpu.dot_dimension_numbers<[1], [0], [0], [1], [0, 0, 1, 1], [], []>} : vector<8x128xf32>, vector<128x512xf32>, vector<8x512xf32> -> vector<8x512xf32>
    %59 = arith.addf %57, %58 : vector<8x512xf32>
    %60 = vector.extract_strided_slice %59 {offsets = [0, 0], sizes = [8, 128], strides = [1, 1]} : vector<8x512xf32> to vector<8x128xf32>
    %cst_34 = arith.constant 5.000000e-01 : f32
    %61 = vector.broadcast %cst_34 : f32 to vector<8x128xf32>
    %62 = arith.mulf %61, %60 : vector<8x128xf32>
    %63 = math.tanh %62 : vector<8x128xf32>
    %cst_35 = arith.constant 1.000000e+00 : f32
    %64 = vector.broadcast %cst_35 : f32 to vector<8x128xf32>
    %65 = arith.addf %63, %64 : vector<8x128xf32>
    %cst_36 = arith.constant 5.000000e-01 : f32
    %66 = vector.broadcast %cst_36 : f32 to vector<8x128xf32>
    %67 = arith.mulf %66, %65 : vector<8x128xf32>
    %68 = vector.extract_strided_slice %59 {offsets = [0, 128], sizes = [8, 128], strides = [1, 1]} : vector<8x512xf32> to vector<8x128xf32>
    %cst_37 = arith.constant 5.000000e-01 : f32
    %69 = vector.broadcast %cst_37 : f32 to vector<8x128xf32>
    %70 = arith.mulf %69, %68 : vector<8x128xf32>
    %71 = math.tanh %70 : vector<8x128xf32>
    %cst_38 = arith.constant 1.000000e+00 : f32
    %72 = vector.broadcast %cst_38 : f32 to vector<8x128xf32>
    %73 = arith.addf %71, %72 : vector<8x128xf32>
    %cst_39 = arith.constant 5.000000e-01 : f32
    %74 = vector.broadcast %cst_39 : f32 to vector<8x128xf32>
    %75 = arith.mulf %74, %73 : vector<8x128xf32>
    %76 = vector.extract_strided_slice %59 {offsets = [0, 256], sizes = [8, 128], strides = [1, 1]} : vector<8x512xf32> to vector<8x128xf32>
    %77 = math.tanh %76 : vector<8x128xf32>
    %78 = vector.extract_strided_slice %59 {offsets = [0, 384], sizes = [8, 128], strides = [1, 1]} : vector<8x512xf32> to vector<8x128xf32>
    %cst_40 = arith.constant 5.000000e-01 : f32
    %79 = vector.broadcast %cst_40 : f32 to vector<8x128xf32>
    %80 = arith.mulf %79, %78 : vector<8x128xf32>
    %81 = math.tanh %80 : vector<8x128xf32>
    %cst_41 = arith.constant 1.000000e+00 : f32
    %82 = vector.broadcast %cst_41 : f32 to vector<8x128xf32>
    %83 = arith.addf %81, %82 : vector<8x128xf32>
    %cst_42 = arith.constant 5.000000e-01 : f32
    %84 = vector.broadcast %cst_42 : f32 to vector<8x128xf32>
    %85 = arith.mulf %84, %83 : vector<8x128xf32>
    %86 = arith.mulf %75, %48 : vector<8x128xf32>
    %87 = arith.mulf %67, %77 : vector<8x128xf32>
    %88 = arith.addf %86, %87 : vector<8x128xf32>
    %89 = math.tanh %88 : vector<8x128xf32>
    %90 = arith.mulf %85, %89 : vector<8x128xf32>
    %91 = arith.index_cast %c1_i32 : i32 to index
    %c0_43 = arith.constant 0 : index
    %c0_44 = arith.constant 0 : index
    %92 = vector.load %arg8[%91, %c0_43, %c0_44] : memref<8x8x128xf32, #tpu.memory_space<vmem>>, vector<1x8x128xf32>
    %93 = vector.shape_cast %92 : vector<1x8x128xf32> to vector<8x128xf32>
    %94 = vector.shape_cast %90 : vector<8x128xf32> to vector<1x8x128xf32>
    tpu.vector_store %arg8[%91, %c0_43, %c0_44], %94 {strides = array<i32>} : memref<8x8x128xf32, #tpu.memory_space<vmem>>, vector<1x8x128xf32>,
    %c2_i32 = arith.constant 2 : i32
    %95 = arith.index_cast %c2_i32 : i32 to index
    %c0_45 = arith.constant 0 : index
    %c0_46 = arith.constant 0 : index
    %96 = vector.load %arg10[%95, %c0_45, %c0_46] : memref<8x8x512xf32, #tpu.memory_space<vmem>>, vector<1x8x512xf32>
    %97 = vector.shape_cast %96 : vector<1x8x512xf32> to vector<8x512xf32>
    %cst_47 = arith.constant dense<0.000000e+00> : vector<8x512xf32>
    %98 = tpu.matmul %90, %12, %cst_47 {dimension_numbers = #tpu.dot_dimension_numbers<[1], [0], [0], [1], [0, 0, 1, 1], [], []>} : vector<8x128xf32>, vector<128x512xf32>, vector<8x512xf32> -> vector<8x512xf32>
    %99 = arith.addf %97, %98 : vector<8x512xf32>
    %100 = vector.extract_strided_slice %99 {offsets = [0, 0], sizes = [8, 128], strides = [1, 1]} : vector<8x512xf32> to vector<8x128xf32>
    %cst_48 = arith.constant 5.000000e-01 : f32
    %101 = vector.broadcast %cst_48 : f32 to vector<8x128xf32>
    %102 = arith.mulf %101, %100 : vector<8x128xf32>
    %103 = math.tanh %102 : vector<8x128xf32>
    %cst_49 = arith.constant 1.000000e+00 : f32
    %104 = vector.broadcast %cst_49 : f32 to vector<8x128xf32>
    %105 = arith.addf %103, %104 : vector<8x128xf32>
    %cst_50 = arith.constant 5.000000e-01 : f32
    %106 = vector.broadcast %cst_50 : f32 to vector<8x128xf32>
    %107 = arith.mulf %106, %105 : vector<8x128xf32>
    %108 = vector.extract_strided_slice %99 {offsets = [0, 128], sizes = [8, 128], strides = [1, 1]} : vector<8x512xf32> to vector<8x128xf32>
    %cst_51 = arith.constant 5.000000e-01 : f32
    %109 = vector.broadcast %cst_51 : f32 to vector<8x128xf32>
    %110 = arith.mulf %109, %108 : vector<8x128xf32>
    %111 = math.tanh %110 : vector<8x128xf32>
    %cst_52 = arith.constant 1.000000e+00 : f32
    %112 = vector.broadcast %cst_52 : f32 to vector<8x128xf32>
    %113 = arith.addf %111, %112 : vector<8x128xf32>
    %cst_53 = arith.constant 5.000000e-01 : f32
    %114 = vector.broadcast %cst_53 : f32 to vector<8x128xf32>
    %115 = arith.mulf %114, %113 : vector<8x128xf32>
    %116 = vector.extract_strided_slice %99 {offsets = [0, 256], sizes = [8, 128], strides = [1, 1]} : vector<8x512xf32> to vector<8x128xf32>
    %117 = math.tanh %116 : vector<8x128xf32>
    %118 = vector.extract_strided_slice %99 {offsets = [0, 384], sizes = [8, 128], strides = [1, 1]} : vector<8x512xf32> to vector<8x128xf32>
    %cst_54 = arith.constant 5.000000e-01 : f32
    %119 = vector.broadcast %cst_54 : f32 to vector<8x128xf32>
    %120 = arith.mulf %119, %118 : vector<8x128xf32>
    %121 = math.tanh %120 : vector<8x128xf32>
    %cst_55 = arith.constant 1.000000e+00 : f32
    %122 = vector.broadcast %cst_55 : f32 to vector<8x128xf32>
    %123 = arith.addf %121, %122 : vector<8x128xf32>
    %cst_56 = arith.constant 5.000000e-01 : f32
    %124 = vector.broadcast %cst_56 : f32 to vector<8x128xf32>
    %125 = arith.mulf %124, %123 : vector<8x128xf32>
    %126 = arith.mulf %115, %88 : vector<8x128xf32>
    %127 = arith.mulf %107, %117 : vector<8x128xf32>
    %128 = arith.addf %126, %127 : vector<8x128xf32>
    %129 = math.tanh %128 : vector<8x128xf32>
    %130 = arith.mulf %125, %129 : vector<8x128xf32>
    %131 = arith.index_cast %c2_i32 : i32 to index
    %c0_57 = arith.constant 0 : index
    %c0_58 = arith.constant 0 : index
    %132 = vector.load %arg8[%131, %c0_57, %c0_58] : memref<8x8x128xf32, #tpu.memory_space<vmem>>, vector<1x8x128xf32>
    %133 = vector.shape_cast %132 : vector<1x8x128xf32> to vector<8x128xf32>
    %134 = vector.shape_cast %130 : vector<8x128xf32> to vector<1x8x128xf32>
    tpu.vector_store %arg8[%131, %c0_57, %c0_58], %134 {strides = array<i32>} : memref<8x8x128xf32, #tpu.memory_space<vmem>>, vector<1x8x128xf32>,
    %c3_i32 = arith.constant 3 : i32
    %135 = arith.index_cast %c3_i32 : i32 to index
    %c0_59 = arith.constant 0 : index
    %c0_60 = arith.constant 0 : index
    %136 = vector.load %arg10[%135, %c0_59, %c0_60] : memref<8x8x512xf32, #tpu.memory_space<vmem>>, vector<1x8x512xf32>
    %137 = vector.shape_cast %136 : vector<1x8x512xf32> to vector<8x512xf32>
    %cst_61 = arith.constant dense<0.000000e+00> : vector<8x512xf32>
    %138 = tpu.matmul %130, %12, %cst_61 {dimension_numbers = #tpu.dot_dimension_numbers<[1], [0], [0], [1], [0, 0, 1, 1], [], []>} : vector<8x128xf32>, vector<128x512xf32>, vector<8x512xf32> -> vector<8x512xf32>
    %139 = arith.addf %137, %138 : vector<8x512xf32>
    %140 = vector.extract_strided_slice %139 {offsets = [0, 0], sizes = [8, 128], strides = [1, 1]} : vector<8x512xf32> to vector<8x128xf32>
    %cst_62 = arith.constant 5.000000e-01 : f32
    %141 = vector.broadcast %cst_62 : f32 to vector<8x128xf32>
    %142 = arith.mulf %141, %140 : vector<8x128xf32>
    %143 = math.tanh %142 : vector<8x128xf32>
    %cst_63 = arith.constant 1.000000e+00 : f32
    %144 = vector.broadcast %cst_63 : f32 to vector<8x128xf32>
    %145 = arith.addf %143, %144 : vector<8x128xf32>
    %cst_64 = arith.constant 5.000000e-01 : f32
    %146 = vector.broadcast %cst_64 : f32 to vector<8x128xf32>
    %147 = arith.mulf %146, %145 : vector<8x128xf32>
    %148 = vector.extract_strided_slice %139 {offsets = [0, 128], sizes = [8, 128], strides = [1, 1]} : vector<8x512xf32> to vector<8x128xf32>
    %cst_65 = arith.constant 5.000000e-01 : f32
    %149 = vector.broadcast %cst_65 : f32 to vector<8x128xf32>
    %150 = arith.mulf %149, %148 : vector<8x128xf32>
    %151 = math.tanh %150 : vector<8x128xf32>
    %cst_66 = arith.constant 1.000000e+00 : f32
    %152 = vector.broadcast %cst_66 : f32 to vector<8x128xf32>
    %153 = arith.addf %151, %152 : vector<8x128xf32>
    %cst_67 = arith.constant 5.000000e-01 : f32
    %154 = vector.broadcast %cst_67 : f32 to vector<8x128xf32>
    %155 = arith.mulf %154, %153 : vector<8x128xf32>
    %156 = vector.extract_strided_slice %139 {offsets = [0, 256], sizes = [8, 128], strides = [1, 1]} : vector<8x512xf32> to vector<8x128xf32>
    %157 = math.tanh %156 : vector<8x128xf32>
    %158 = vector.extract_strided_slice %139 {offsets = [0, 384], sizes = [8, 128], strides = [1, 1]} : vector<8x512xf32> to vector<8x128xf32>
    %cst_68 = arith.constant 5.000000e-01 : f32
    %159 = vector.broadcast %cst_68 : f32 to vector<8x128xf32>
    %160 = arith.mulf %159, %158 : vector<8x128xf32>
    %161 = math.tanh %160 : vector<8x128xf32>
    %cst_69 = arith.constant 1.000000e+00 : f32
    %162 = vector.broadcast %cst_69 : f32 to vector<8x128xf32>
    %163 = arith.addf %161, %162 : vector<8x128xf32>
    %cst_70 = arith.constant 5.000000e-01 : f32
    %164 = vector.broadcast %cst_70 : f32 to vector<8x128xf32>
    %165 = arith.mulf %164, %163 : vector<8x128xf32>
    %166 = arith.mulf %155, %128 : vector<8x128xf32>
    %167 = arith.mulf %147, %157 : vector<8x128xf32>
    %168 = arith.addf %166, %167 : vector<8x128xf32>
    %169 = math.tanh %168 : vector<8x128xf32>
    %170 = arith.mulf %165, %169 : vector<8x128xf32>
    %171 = arith.index_cast %c3_i32 : i32 to index
    %c0_71 = arith.constant 0 : index
    %c0_72 = arith.constant 0 : index
    %172 = vector.load %arg8[%171, %c0_71, %c0_72] : memref<8x8x128xf32, #tpu.memory_space<vmem>>, vector<1x8x128xf32>
    %173 = vector.shape_cast %172 : vector<1x8x128xf32> to vector<8x128xf32>
    %174 = vector.shape_cast %170 : vector<8x128xf32> to vector<1x8x128xf32>
    tpu.vector_store %arg8[%171, %c0_71, %c0_72], %174 {strides = array<i32>} : memref<8x8x128xf32, #tpu.memory_space<vmem>>, vector<1x8x128xf32>,
    %c4_i32 = arith.constant 4 : i32
    %175 = arith.index_cast %c4_i32 : i32 to index
    %c0_73 = arith.constant 0 : index
    %c0_74 = arith.constant 0 : index
    %176 = vector.load %arg10[%175, %c0_73, %c0_74] : memref<8x8x512xf32, #tpu.memory_space<vmem>>, vector<1x8x512xf32>
    %177 = vector.shape_cast %176 : vector<1x8x512xf32> to vector<8x512xf32>
    %cst_75 = arith.constant dense<0.000000e+00> : vector<8x512xf32>
    %178 = tpu.matmul %170, %12, %cst_75 {dimension_numbers = #tpu.dot_dimension_numbers<[1], [0], [0], [1], [0, 0, 1, 1], [], []>} : vector<8x128xf32>, vector<128x512xf32>, vector<8x512xf32> -> vector<8x512xf32>
    %179 = arith.addf %177, %178 : vector<8x512xf32>
    %180 = vector.extract_strided_slice %179 {offsets = [0, 0], sizes = [8, 128], strides = [1, 1]} : vector<8x512xf32> to vector<8x128xf32>
    %cst_76 = arith.constant 5.000000e-01 : f32
    %181 = vector.broadcast %cst_76 : f32 to vector<8x128xf32>
    %182 = arith.mulf %181, %180 : vector<8x128xf32>
    %183 = math.tanh %182 : vector<8x128xf32>
    %cst_77 = arith.constant 1.000000e+00 : f32
    %184 = vector.broadcast %cst_77 : f32 to vector<8x128xf32>
    %185 = arith.addf %183, %184 : vector<8x128xf32>
    %cst_78 = arith.constant 5.000000e-01 : f32
    %186 = vector.broadcast %cst_78 : f32 to vector<8x128xf32>
    %187 = arith.mulf %186, %185 : vector<8x128xf32>
    %188 = vector.extract_strided_slice %179 {offsets = [0, 128], sizes = [8, 128], strides = [1, 1]} : vector<8x512xf32> to vector<8x128xf32>
    %cst_79 = arith.constant 5.000000e-01 : f32
    %189 = vector.broadcast %cst_79 : f32 to vector<8x128xf32>
    %190 = arith.mulf %189, %188 : vector<8x128xf32>
    %191 = math.tanh %190 : vector<8x128xf32>
    %cst_80 = arith.constant 1.000000e+00 : f32
    %192 = vector.broadcast %cst_80 : f32 to vector<8x128xf32>
    %193 = arith.addf %191, %192 : vector<8x128xf32>
    %cst_81 = arith.constant 5.000000e-01 : f32
    %194 = vector.broadcast %cst_81 : f32 to vector<8x128xf32>
    %195 = arith.mulf %194, %193 : vector<8x128xf32>
    %196 = vector.extract_strided_slice %179 {offsets = [0, 256], sizes = [8, 128], strides = [1, 1]} : vector<8x512xf32> to vector<8x128xf32>
    %197 = math.tanh %196 : vector<8x128xf32>
    %198 = vector.extract_strided_slice %179 {offsets = [0, 384], sizes = [8, 128], strides = [1, 1]} : vector<8x512xf32> to vector<8x128xf32>
    %cst_82 = arith.constant 5.000000e-01 : f32
    %199 = vector.broadcast %cst_82 : f32 to vector<8x128xf32>
    %200 = arith.mulf %199, %198 : vector<8x128xf32>
    %201 = math.tanh %200 : vector<8x128xf32>
    %cst_83 = arith.constant 1.000000e+00 : f32
    %202 = vector.broadcast %cst_83 : f32 to vector<8x128xf32>
    %203 = arith.addf %201, %202 : vector<8x128xf32>
    %cst_84 = arith.constant 5.000000e-01 : f32
    %204 = vector.broadcast %cst_84 : f32 to vector<8x128xf32>
    %205 = arith.mulf %204, %203 : vector<8x128xf32>
    %206 = arith.mulf %195, %168 : vector<8x128xf32>
    %207 = arith.mulf %187, %197 : vector<8x128xf32>
    %208 = arith.addf %206, %207 : vector<8x128xf32>
    %209 = math.tanh %208 : vector<8x128xf32>
    %210 = arith.mulf %205, %209 : vector<8x128xf32>
    %211 = arith.index_cast %c4_i32 : i32 to index
    %c0_85 = arith.constant 0 : index
    %c0_86 = arith.constant 0 : index
    %212 = vector.load %arg8[%211, %c0_85, %c0_86] : memref<8x8x128xf32, #tpu.memory_space<vmem>>, vector<1x8x128xf32>
    %213 = vector.shape_cast %212 : vector<1x8x128xf32> to vector<8x128xf32>
    %214 = vector.shape_cast %210 : vector<8x128xf32> to vector<1x8x128xf32>
    tpu.vector_store %arg8[%211, %c0_85, %c0_86], %214 {strides = array<i32>} : memref<8x8x128xf32, #tpu.memory_space<vmem>>, vector<1x8x128xf32>,
    %c5_i32 = arith.constant 5 : i32
    %215 = arith.index_cast %c5_i32 : i32 to index
    %c0_87 = arith.constant 0 : index
    %c0_88 = arith.constant 0 : index
    %216 = vector.load %arg10[%215, %c0_87, %c0_88] : memref<8x8x512xf32, #tpu.memory_space<vmem>>, vector<1x8x512xf32>
    %217 = vector.shape_cast %216 : vector<1x8x512xf32> to vector<8x512xf32>
    %cst_89 = arith.constant dense<0.000000e+00> : vector<8x512xf32>
    %218 = tpu.matmul %210, %12, %cst_89 {dimension_numbers = #tpu.dot_dimension_numbers<[1], [0], [0], [1], [0, 0, 1, 1], [], []>} : vector<8x128xf32>, vector<128x512xf32>, vector<8x512xf32> -> vector<8x512xf32>
    %219 = arith.addf %217, %218 : vector<8x512xf32>
    %220 = vector.extract_strided_slice %219 {offsets = [0, 0], sizes = [8, 128], strides = [1, 1]} : vector<8x512xf32> to vector<8x128xf32>
    %cst_90 = arith.constant 5.000000e-01 : f32
    %221 = vector.broadcast %cst_90 : f32 to vector<8x128xf32>
    %222 = arith.mulf %221, %220 : vector<8x128xf32>
    %223 = math.tanh %222 : vector<8x128xf32>
    %cst_91 = arith.constant 1.000000e+00 : f32
    %224 = vector.broadcast %cst_91 : f32 to vector<8x128xf32>
    %225 = arith.addf %223, %224 : vector<8x128xf32>
    %cst_92 = arith.constant 5.000000e-01 : f32
    %226 = vector.broadcast %cst_92 : f32 to vector<8x128xf32>
    %227 = arith.mulf %226, %225 : vector<8x128xf32>
    %228 = vector.extract_strided_slice %219 {offsets = [0, 128], sizes = [8, 128], strides = [1, 1]} : vector<8x512xf32> to vector<8x128xf32>
    %cst_93 = arith.constant 5.000000e-01 : f32
    %229 = vector.broadcast %cst_93 : f32 to vector<8x128xf32>
    %230 = arith.mulf %229, %228 : vector<8x128xf32>
    %231 = math.tanh %230 : vector<8x128xf32>
    %cst_94 = arith.constant 1.000000e+00 : f32
    %232 = vector.broadcast %cst_94 : f32 to vector<8x128xf32>
    %233 = arith.addf %231, %232 : vector<8x128xf32>
    %cst_95 = arith.constant 5.000000e-01 : f32
    %234 = vector.broadcast %cst_95 : f32 to vector<8x128xf32>
    %235 = arith.mulf %234, %233 : vector<8x128xf32>
    %236 = vector.extract_strided_slice %219 {offsets = [0, 256], sizes = [8, 128], strides = [1, 1]} : vector<8x512xf32> to vector<8x128xf32>
    %237 = math.tanh %236 : vector<8x128xf32>
    %238 = vector.extract_strided_slice %219 {offsets = [0, 384], sizes = [8, 128], strides = [1, 1]} : vector<8x512xf32> to vector<8x128xf32>
    %cst_96 = arith.constant 5.000000e-01 : f32
    %239 = vector.broadcast %cst_96 : f32 to vector<8x128xf32>
    %240 = arith.mulf %239, %238 : vector<8x128xf32>
    %241 = math.tanh %240 : vector<8x128xf32>
    %cst_97 = arith.constant 1.000000e+00 : f32
    %242 = vector.broadcast %cst_97 : f32 to vector<8x128xf32>
    %243 = arith.addf %241, %242 : vector<8x128xf32>
    %cst_98 = arith.constant 5.000000e-01 : f32
    %244 = vector.broadcast %cst_98 : f32 to vector<8x128xf32>
    %245 = arith.mulf %244, %243 : vector<8x128xf32>
    %246 = arith.mulf %235, %208 : vector<8x128xf32>
    %247 = arith.mulf %227, %237 : vector<8x128xf32>
    %248 = arith.addf %246, %247 : vector<8x128xf32>
    %249 = math.tanh %248 : vector<8x128xf32>
    %250 = arith.mulf %245, %249 : vector<8x128xf32>
    %251 = arith.index_cast %c5_i32 : i32 to index
    %c0_99 = arith.constant 0 : index
    %c0_100 = arith.constant 0 : index
    %252 = vector.load %arg8[%251, %c0_99, %c0_100] : memref<8x8x128xf32, #tpu.memory_space<vmem>>, vector<1x8x128xf32>
    %253 = vector.shape_cast %252 : vector<1x8x128xf32> to vector<8x128xf32>
    %254 = vector.shape_cast %250 : vector<8x128xf32> to vector<1x8x128xf32>
    tpu.vector_store %arg8[%251, %c0_99, %c0_100], %254 {strides = array<i32>} : memref<8x8x128xf32, #tpu.memory_space<vmem>>, vector<1x8x128xf32>,
    %c6_i32 = arith.constant 6 : i32
    %255 = arith.index_cast %c6_i32 : i32 to index
    %c0_101 = arith.constant 0 : index
    %c0_102 = arith.constant 0 : index
    %256 = vector.load %arg10[%255, %c0_101, %c0_102] : memref<8x8x512xf32, #tpu.memory_space<vmem>>, vector<1x8x512xf32>
    %257 = vector.shape_cast %256 : vector<1x8x512xf32> to vector<8x512xf32>
    %cst_103 = arith.constant dense<0.000000e+00> : vector<8x512xf32>
    %258 = tpu.matmul %250, %12, %cst_103 {dimension_numbers = #tpu.dot_dimension_numbers<[1], [0], [0], [1], [0, 0, 1, 1], [], []>} : vector<8x128xf32>, vector<128x512xf32>, vector<8x512xf32> -> vector<8x512xf32>
    %259 = arith.addf %257, %258 : vector<8x512xf32>
    %260 = vector.extract_strided_slice %259 {offsets = [0, 0], sizes = [8, 128], strides = [1, 1]} : vector<8x512xf32> to vector<8x128xf32>
    %cst_104 = arith.constant 5.000000e-01 : f32
    %261 = vector.broadcast %cst_104 : f32 to vector<8x128xf32>
    %262 = arith.mulf %261, %260 : vector<8x128xf32>
    %263 = math.tanh %262 : vector<8x128xf32>
    %cst_105 = arith.constant 1.000000e+00 : f32
    %264 = vector.broadcast %cst_105 : f32 to vector<8x128xf32>
    %265 = arith.addf %263, %264 : vector<8x128xf32>
    %cst_106 = arith.constant 5.000000e-01 : f32
    %266 = vector.broadcast %cst_106 : f32 to vector<8x128xf32>
    %267 = arith.mulf %266, %265 : vector<8x128xf32>
    %268 = vector.extract_strided_slice %259 {offsets = [0, 128], sizes = [8, 128], strides = [1, 1]} : vector<8x512xf32> to vector<8x128xf32>
    %cst_107 = arith.constant 5.000000e-01 : f32
    %269 = vector.broadcast %cst_107 : f32 to vector<8x128xf32>
    %270 = arith.mulf %269, %268 : vector<8x128xf32>
    %271 = math.tanh %270 : vector<8x128xf32>
    %cst_108 = arith.constant 1.000000e+00 : f32
    %272 = vector.broadcast %cst_108 : f32 to vector<8x128xf32>
    %273 = arith.addf %271, %272 : vector<8x128xf32>
    %cst_109 = arith.constant 5.000000e-01 : f32
    %274 = vector.broadcast %cst_109 : f32 to vector<8x128xf32>
    %275 = arith.mulf %274, %273 : vector<8x128xf32>
    %276 = vector.extract_strided_slice %259 {offsets = [0, 256], sizes = [8, 128], strides = [1, 1]} : vector<8x512xf32> to vector<8x128xf32>
    %277 = math.tanh %276 : vector<8x128xf32>
    %278 = vector.extract_strided_slice %259 {offsets = [0, 384], sizes = [8, 128], strides = [1, 1]} : vector<8x512xf32> to vector<8x128xf32>
    %cst_110 = arith.constant 5.000000e-01 : f32
    %279 = vector.broadcast %cst_110 : f32 to vector<8x128xf32>
    %280 = arith.mulf %279, %278 : vector<8x128xf32>
    %281 = math.tanh %280 : vector<8x128xf32>
    %cst_111 = arith.constant 1.000000e+00 : f32
    %282 = vector.broadcast %cst_111 : f32 to vector<8x128xf32>
    %283 = arith.addf %281, %282 : vector<8x128xf32>
    %cst_112 = arith.constant 5.000000e-01 : f32
    %284 = vector.broadcast %cst_112 : f32 to vector<8x128xf32>
    %285 = arith.mulf %284, %283 : vector<8x128xf32>
    %286 = arith.mulf %275, %248 : vector<8x128xf32>
    %287 = arith.mulf %267, %277 : vector<8x128xf32>
    %288 = arith.addf %286, %287 : vector<8x128xf32>
    %289 = math.tanh %288 : vector<8x128xf32>
    %290 = arith.mulf %285, %289 : vector<8x128xf32>
    %291 = arith.index_cast %c6_i32 : i32 to index
    %c0_113 = arith.constant 0 : index
    %c0_114 = arith.constant 0 : index
    %292 = vector.load %arg8[%291, %c0_113, %c0_114] : memref<8x8x128xf32, #tpu.memory_space<vmem>>, vector<1x8x128xf32>
    %293 = vector.shape_cast %292 : vector<1x8x128xf32> to vector<8x128xf32>
    %294 = vector.shape_cast %290 : vector<8x128xf32> to vector<1x8x128xf32>
    tpu.vector_store %arg8[%291, %c0_113, %c0_114], %294 {strides = array<i32>} : memref<8x8x128xf32, #tpu.memory_space<vmem>>, vector<1x8x128xf32>,
    %c7_i32 = arith.constant 7 : i32
    %295 = arith.index_cast %c7_i32 : i32 to index
    %c0_115 = arith.constant 0 : index
    %c0_116 = arith.constant 0 : index
    %296 = vector.load %arg10[%295, %c0_115, %c0_116] : memref<8x8x512xf32, #tpu.memory_space<vmem>>, vector<1x8x512xf32>
    %297 = vector.shape_cast %296 : vector<1x8x512xf32> to vector<8x512xf32>
    %cst_117 = arith.constant dense<0.000000e+00> : vector<8x512xf32>
    %298 = tpu.matmul %290, %12, %cst_117 {dimension_numbers = #tpu.dot_dimension_numbers<[1], [0], [0], [1], [0, 0, 1, 1], [], []>} : vector<8x128xf32>, vector<128x512xf32>, vector<8x512xf32> -> vector<8x512xf32>
    %299 = arith.addf %297, %298 : vector<8x512xf32>
    %300 = vector.extract_strided_slice %299 {offsets = [0, 0], sizes = [8, 128], strides = [1, 1]} : vector<8x512xf32> to vector<8x128xf32>
    %cst_118 = arith.constant 5.000000e-01 : f32
    %301 = vector.broadcast %cst_118 : f32 to vector<8x128xf32>
    %302 = arith.mulf %301, %300 : vector<8x128xf32>
    %303 = math.tanh %302 : vector<8x128xf32>
    %cst_119 = arith.constant 1.000000e+00 : f32
    %304 = vector.broadcast %cst_119 : f32 to vector<8x128xf32>
    %305 = arith.addf %303, %304 : vector<8x128xf32>
    %cst_120 = arith.constant 5.000000e-01 : f32
    %306 = vector.broadcast %cst_120 : f32 to vector<8x128xf32>
    %307 = arith.mulf %306, %305 : vector<8x128xf32>
    %308 = vector.extract_strided_slice %299 {offsets = [0, 128], sizes = [8, 128], strides = [1, 1]} : vector<8x512xf32> to vector<8x128xf32>
    %cst_121 = arith.constant 5.000000e-01 : f32
    %309 = vector.broadcast %cst_121 : f32 to vector<8x128xf32>
    %310 = arith.mulf %309, %308 : vector<8x128xf32>
    %311 = math.tanh %310 : vector<8x128xf32>
    %cst_122 = arith.constant 1.000000e+00 : f32
    %312 = vector.broadcast %cst_122 : f32 to vector<8x128xf32>
    %313 = arith.addf %311, %312 : vector<8x128xf32>
    %cst_123 = arith.constant 5.000000e-01 : f32
    %314 = vector.broadcast %cst_123 : f32 to vector<8x128xf32>
    %315 = arith.mulf %314, %313 : vector<8x128xf32>
    %316 = vector.extract_strided_slice %299 {offsets = [0, 256], sizes = [8, 128], strides = [1, 1]} : vector<8x512xf32> to vector<8x128xf32>
    %317 = math.tanh %316 : vector<8x128xf32>
    %318 = vector.extract_strided_slice %299 {offsets = [0, 384], sizes = [8, 128], strides = [1, 1]} : vector<8x512xf32> to vector<8x128xf32>
    %cst_124 = arith.constant 5.000000e-01 : f32
    %319 = vector.broadcast %cst_124 : f32 to vector<8x128xf32>
    %320 = arith.mulf %319, %318 : vector<8x128xf32>
    %321 = math.tanh %320 : vector<8x128xf32>
    %cst_125 = arith.constant 1.000000e+00 : f32
    %322 = vector.broadcast %cst_125 : f32 to vector<8x128xf32>
    %323 = arith.addf %321, %322 : vector<8x128xf32>
    %cst_126 = arith.constant 5.000000e-01 : f32
    %324 = vector.broadcast %cst_126 : f32 to vector<8x128xf32>
    %325 = arith.mulf %324, %323 : vector<8x128xf32>
    %326 = arith.mulf %315, %288 : vector<8x128xf32>
    %327 = arith.mulf %307, %317 : vector<8x128xf32>
    %328 = arith.addf %326, %327 : vector<8x128xf32>
    %329 = math.tanh %328 : vector<8x128xf32>
    %330 = arith.mulf %325, %329 : vector<8x128xf32>
    %331 = arith.index_cast %c7_i32 : i32 to index
    %c0_127 = arith.constant 0 : index
    %c0_128 = arith.constant 0 : index
    %332 = vector.load %arg8[%331, %c0_127, %c0_128] : memref<8x8x128xf32, #tpu.memory_space<vmem>>, vector<1x8x128xf32>
    %333 = vector.shape_cast %332 : vector<1x8x128xf32> to vector<8x128xf32>
    %334 = vector.shape_cast %330 : vector<8x128xf32> to vector<1x8x128xf32>
    tpu.vector_store %arg8[%331, %c0_127, %c0_128], %334 {strides = array<i32>} : memref<8x8x128xf32, #tpu.memory_space<vmem>>, vector<1x8x128xf32>,
    %c8_i32 = arith.constant 8 : i32
    %c0_129 = arith.constant 0 : index
    %c0_130 = arith.constant 0 : index
    %335 = vector.load %arg11[%c0_129, %c0_130] : memref<8x128xf32, #tpu.memory_space<vmem>>, vector<8x128xf32>
    tpu.vector_store %arg11[%c0_129, %c0_130], %330 {strides = array<i32>} : memref<8x128xf32, #tpu.memory_space<vmem>>, vector<8x128xf32>,
    %c0_131 = arith.constant 0 : index
    %c0_132 = arith.constant 0 : index
    %336 = vector.load %arg12[%c0_131, %c0_132] : memref<8x128xf32, #tpu.memory_space<vmem>>, vector<8x128xf32>
    tpu.vector_store %arg12[%c0_131, %c0_132], %328 {strides = array<i32>} : memref<8x128xf32, #tpu.memory_space<vmem>>, vector<8x128xf32>,
    %c0_i32_133 = arith.constant 0 : i32
    %337 = arith.cmpi eq, %arg1, %c0_i32_133 : i32
    %338 = arith.extui %337 : i1 to i32
    %c0_i32_134 = arith.constant 0 : i32
    %339 = arith.cmpi ne, %338, %c0_i32_134 : i32
    scf.if %339 {
      %c0_135 = arith.constant 0 : index
      %c0_136 = arith.constant 0 : index
      %340 = vector.load %arg9[%c0_135, %c0_136] : memref<8x128xf32, #tpu.memory_space<vmem>>, vector<8x128xf32>
      tpu.vector_store %arg9[%c0_135, %c0_136], %328 {strides = array<i32>} : memref<8x128xf32, #tpu.memory_space<vmem>>, vector<8x128xf32>,
    } else {
    }
    return
  }
  func.func @transform_0(%arg0: i32, %arg1: i32) -> (i32, i32, i32) {
    %c0_i32 = arith.constant 0 : i32
    %c0_i32_0 = arith.constant 0 : i32
    return %arg1, %arg0, %c0_i32 : i32, i32, i32
  }
  func.func @transform_1(%arg0: i32, %arg1: i32) -> (i32, i32) {
    %c0_i32 = arith.constant 0 : i32
    %c0_i32_0 = arith.constant 0 : i32
    %c0_i32_1 = arith.constant 0 : i32
    return %c0_i32, %c0_i32_0 : i32, i32
  }
  func.func @transform_2(%arg0: i32, %arg1: i32) -> (i32, i32) {
    %c0_i32 = arith.constant 0 : i32
    %c0_i32_0 = arith.constant 0 : i32
    %c0_i32_1 = arith.constant 0 : i32
    return %c0_i32, %c0_i32_0 : i32, i32
  }
  func.func @transform_3(%arg0: i32, %arg1: i32) -> (i32, i32) {
    %c0_i32 = arith.constant 0 : i32
    %c0_i32_0 = arith.constant 0 : i32
    %c0_i32_1 = arith.constant 0 : i32
    return %c0_i32, %c0_i32_0 : i32, i32
  }
  func.func @transform_4(%arg0: i32, %arg1: i32) -> (i32, i32) {
    %c0_i32 = arith.constant 0 : i32
    %c0_i32_0 = arith.constant 0 : i32
    return %arg0, %c0_i32 : i32, i32
  }
  func.func @transform_5(%arg0: i32, %arg1: i32) -> (i32, i32) {
    %c0_i32 = arith.constant 0 : i32
    %c0_i32_0 = arith.constant 0 : i32
    return %arg0, %c0_i32 : i32, i32
  }
  func.func @transform_6(%arg0: i32, %arg1: i32) -> (i32, i32, i32) {
    %c0_i32 = arith.constant 0 : i32
    %c0_i32_0 = arith.constant 0 : i32
    return %arg1, %arg0, %c0_i32 : i32, i32, i32
  }
  func.func @transform_7(%arg0: i32, %arg1: i32) -> (i32, i32) {
    %c0_i32 = arith.constant 0 : i32
    %c0_i32_0 = arith.constant 0 : i32
    return %arg0, %c0_i32 : i32, i32
  }
}

</mosaic_0001>

<llo_original>
// kernel: tpu_custom_call.1
$region0: #{tpu_custom_call.1}
  #allocation0 [shape = 'u32[]', space=smem, size = 0x4, offset = 0x4, fixed_abs, tag = 'smem constant byte address 0x4 - core index']
  #allocation1 [shape = 'u32[144,128]{1,0:T(1,128)}', space=vmem, size = 0x12000, scoped, tag = 'internal scratch']
  #allocation2 [shape = 'f32[8,8,512]{2,1,0:T(8,128)}', space=vmem, size = 0x20000, scoped, tag = 'scratch operand']
  #allocation3 [shape = 'f32[8,128]{1,0:T(8,128)}', space=vmem, size = 0x1000, scoped, tag = 'scratch operand']
  #allocation4 [shape = 'f32[8,128]{1,0:T(8,128)}', space=vmem, size = 0x1000, scoped, tag = 'scratch operand']
  %s0 = inlined_call_operand.vmem [shape: f32[8,8,4], index: 0, kind: input, shape index: {}]
  %s1 = inlined_call_operand.vmem [shape: f32[4,512], index: 1, kind: input, shape index: {}]
  %s2 = inlined_call_operand.hbm [shape: f32[128,512], index: 2, kind: input, shape index: {}]
  %s3 = inlined_call_operand.vmem [shape: f32[1,512], index: 3, kind: input, shape index: {}]
  %s4 = inlined_call_operand.vmem [shape: f32[8,128], index: 4, kind: input, shape index: {}]
  %s5 = inlined_call_operand.vmem [shape: f32[8,128], index: 5, kind: input, shape index: {}]
  %s6 = inlined_call_operand.hbm [shape: f32[8,8,128], index: 6, kind: output, shape index: {0}]
  %s7 = inlined_call_operand.hbm [shape: f32[8,128], index: 7, kind: output, shape index: {1}]
  %8 = xla_tuple %s6, %s7
  %s9 = sld [smem:[#allocation0]]
  $region54: #{tpu_custom_call.1} parent=0
    _
  %s11 = ssub.s32 1, %s9
  %s12 = scalar_select 0, %s11, %s9
  $region1: #{tpu_custom_call.1} parent=0
    #allocation5 [shape = 'u8[262144]{0}', space=vmem, size = 0x40000, scoped, tag = 'input window, operand 2, single buffered']
    #allocation6 [shape = 's32[1]{0}', space=sflag, size = 0x4, scoped, tag = 'scoped memory for tpu_custom_call.1']
    #allocation7 [shape = 's32[1]{0}', space=sflag, size = 0x4, scoped, tag = 'scoped memory for tpu_custom_call.1']
    #allocation8 [shape = 'u8[32768]{0}', space=vmem, size = 0x8000, scoped, tag = 'output window, operand 0, single buffered']
    #allocation9 [shape = 'u8[4096]{0}', space=vmem, size = 0x1000, scoped, tag = 'output window, operand 1, single buffered']
    #allocation10 [shape = 's32[1]{0}', space=sflag, size = 0x4, scoped, tag = 'scoped memory for tpu_custom_call.1']
    %13 = vsyncpa [#allocation6], 0
    %14 = vsyncpa [#allocation7], 0
    %15 = vsyncpa [#allocation10], 0
    // Predicated region
    $region2: #{tpu_custom_call.1} parent=1 // pred_check
      _
    $region3: #{tpu_custom_call.1} parent=1 // pred_check_branch
      %17 = sbr.rel (0) target = $region5
    $region4: #{tpu_custom_call.1} parent=1 // pred_region
      _
    $region5: #{tpu_custom_call.1} parent=1 // pred_fallthru
      _
    // Predicated region
    $region6: #{tpu_custom_call.1} parent=1 // pred_check
      _
    $region7: #{tpu_custom_call.1} parent=1 // pred_check_branch
      %19 = sbr.rel (0) target = $region9
    $region8: #{tpu_custom_call.1} parent=1 // pred_region
      _
    $region9: #{tpu_custom_call.1} parent=1 // pred_fallthru
      _
    // Predicated region
    $region10: #{tpu_custom_call.1} parent=1 // pred_check
      _
    $region11: #{tpu_custom_call.1} parent=1 // pred_check_branch
      %21 = sbr.rel (0) target = $region13
    $region12: #{tpu_custom_call.1} parent=1 // pred_region
      %s23 = ssub.s32 8192, 8192
      %24 = vsyncadd [#allocation6], %s23
      %s25 = sshll.u32 [#allocation5], 4
      %s26 = int_to_ptr.vmem [resolvable:$true] %s25
      %31 = dma.hbm_to_vmem [thread:$0]  %s2, 8192, %s26, [#allocation6], 512, 512, 32
    $region13: #{tpu_custom_call.1} parent=1 // pred_fallthru
      _
    // Predicated region
    $region14: #{tpu_custom_call.1} parent=1 // pred_check
      _
    $region15: #{tpu_custom_call.1} parent=1 // pred_check_branch
      %33 = sbr.rel (0) target = $region17
    $region16: #{tpu_custom_call.1} parent=1 // pred_region
      _
    $region17: #{tpu_custom_call.1} parent=1 // pred_fallthru
      _
    // Predicated region
    $region18: #{tpu_custom_call.1} parent=1 // pred_check
      _
    $region19: #{tpu_custom_call.1} parent=1 // pred_check_branch
      %35 = sbr.rel (0) target = $region21
    $region20: #{tpu_custom_call.1} parent=1 // pred_region
      _
    $region21: #{tpu_custom_call.1} parent=1 // pred_fallthru
      _
    // Predicated region
    $region22: #{tpu_custom_call.1} parent=1 // pred_check
      _
    $region23: #{tpu_custom_call.1} parent=1 // pred_check_branch
      %37 = sbr.rel (0) target = $region25
    $region24: #{tpu_custom_call.1} parent=1 // pred_region
      _
    $region25: #{tpu_custom_call.1} parent=1 // pred_fallthru
      _
    // Predicated region
    $region26: #{tpu_custom_call.1} parent=1 // pred_check
      _
    $region27: #{tpu_custom_call.1} parent=1 // pred_check_branch
      %39 = sbr.rel (0) target = $region29
    $region28: #{tpu_custom_call.1} parent=1 // pred_region
      %40 = dma.done [#allocation6], 8192
    $region29: #{tpu_custom_call.1} parent=1 // pred_fallthru
      _
    %p41 = scmp.eq.s32.totalorder 0, 0
    // Predicated region
    $region30: #{tpu_custom_call.1} parent=1 // pred_check
      %p42 = pneg %p41
    $region31: #{tpu_custom_call.1} parent=1 // pred_check_branch
      %44 = sbr.rel (%p42) target = $region33
    $region32: #{tpu_custom_call.1} parent=1 // pred_region
      %v45 = vld [vmem:[%s4] sm:$0xff]
      %46 = vst [vmem:[#allocation3] sm:$0xff] %v45
      %v47 = vld [vmem:[%s5] sm:$0xff]
      %48 = vst [vmem:[#allocation4] sm:$0xff] %v47
    $region33: #{tpu_custom_call.1} parent=1 // pred_fallthru
      _
    %v49 = vld [vmem:[%s0] sm:$0xff]
    %v50 = vld [vmem:[%s0 + $0x8] sm:$0xff]
    %v51 = vld [vmem:[%s0 + $0x10] sm:$0xff]
    %v52 = vld [vmem:[%s0 + $0x18] sm:$0xff]
    %v53 = vld [vmem:[%s0 + $0x20] sm:$0xff]
    %v54 = vld [vmem:[%s0 + $0x28] sm:$0xff]
    %v55 = vld [vmem:[%s0 + $0x30] sm:$0xff]
    %v56 = vld [vmem:[%s0 + $0x38] sm:$0xff]
    %v57 = vld [vmem:[%s1] sm:$0xff]
    %v58 = vld [vmem:[%s1 + $0x8] sm:$0xff]
    %v59 = vld [vmem:[%s3] sm:$0xf]
    %v61 = vlaneseq
    %v62 = vshrl.u32 %v61, 7
    %v63 = vsub.s32 0, %v62
    %v64 = vrot.slane %v59, %v63
    %v65 = vlaneseq
    %v66 = vshrl.u32 %v65, 7
    %v67 = vsub.s32 1, %v66
    %v68 = vrot.slane %v59, %v67
    %v69 = vlaneseq
    %v70 = vshrl.u32 %v69, 7
    %v71 = vsub.s32 2, %v70
    %v72 = vrot.slane %v59, %v71
    %v73 = vlaneseq
    %v74 = vshrl.u32 %v73, 7
    %v75 = vsub.s32 3, %v74
    %v76 = vrot.slane %v59, %v75
    %v83 = vcombine.high %v57, %v57
    %v84 = vcombine.high %v58, %v58
    %vm85 = vcmask 31744
    %v87 = vsel %vm85, %v49, 0
    %v90 = vsel %vm85, %v50, 0
    %v93 = vsel %vm85, %v51, 0
    %v96 = vsel %vm85, %v52, 0
    %v99 = vsel %vm85, %v53, 0
    %v102 = vsel %vm85, %v54, 0
    %v105 = vsel %vm85, %v55, 0
    %v108 = vsel %vm85, %v56, 0
    %vm110 = vcmask 1043456
    %v111 = vsel %vm110, %v57, 0
    %v113 = vsel %vm110, %v83, 0
    %v115 = vsel %vm110, %v58, 0
    %v117 = vsel %vm110, %v84, 0
    %119 = vmatprep.subr.mxu0 %v113
    %120 = vmatpush1.msra.mxu0 %v111
    %121 = vmatprep.subr.mxu0 0.0
    %122 = vmatpush1.msra.mxu0 0.0
    %123 = vmatprep.subr.mxu0 0.0
    %124 = vmatpush1.msra.mxu0 0.0
    %125 = vmatprep.subr.mxu0 0.0
    %126 = vmatpush1.msra.mxu0 0.0
    %127 = vmatprep.subr.mxu0 0.0
    %128 = vmatpush1.msra.mxu0 0.0
    %129 = vmatprep.subr.mxu0 0.0
    %130 = vmatpush1.msra.mxu0 0.0
    %131 = vmatprep.subr.mxu0 0.0
    %132 = vmatpush1.msra.mxu0 0.0
    %133 = vmatprep.subr.mxu0 0.0
    %134 = vmatpush1.msra.mxu0 0.0
    %135 = vmatprep.subr.mxu0 0.0
    %136 = vmatpush1.msra.mxu0 0.0
    %137 = vmatprep.subr.mxu0 0.0
    %138 = vmatpush1.msra.mxu0 0.0
    %139 = vmatprep.subr.mxu0 0.0
    %140 = vmatpush1.msra.mxu0 0.0
    %141 = vmatprep.subr.mxu0 0.0
    %142 = vmatpush1.msra.mxu0 0.0
    %143 = vmatprep.subr.mxu0 0.0
    %144 = vmatpush1.msra.mxu0 0.0
    %145 = vmatprep.subr.mxu0 0.0
    %146 = vmatpush1.msra.mxu0 0.0
    %147 = vmatprep.subr.mxu0 0.0
    %148 = vmatpush1.msra.mxu0 0.0
    %149 = vmatprep.subr.mxu0 0.0
    %150 = vmatpush1.msra.mxu0 0.0
    %151 = vmatprep.subr.mxu0 0.0
    %152 = vmatpush1.msra.mxu0 0.0
    %153 = vmatprep.subr.mxu0 0.0
    %154 = vmatpush1.msra.mxu0 0.0
    %155 = vmatprep.subr.mxu0 0.0
    %156 = vmatpush1.msra.mxu0 0.0
    %157 = vmatprep.subr.mxu0 0.0
    %158 = vmatpush1.msra.mxu0 0.0
    %159 = vmatprep.subr.mxu0 0.0
    %160 = vmatpush1.msra.mxu0 0.0
    %161 = vmatprep.subr.mxu0 0.0
    %162 = vmatpush1.msra.mxu0 0.0
    %163 = vmatprep.subr.mxu0 0.0
    %164 = vmatpush1.msra.mxu0 0.0
    %165 = vmatprep.subr.mxu0 0.0
    %166 = vmatpush1.msra.mxu0 0.0
    %167 = vmatprep.subr.mxu0 0.0
    %168 = vmatpush1.msra.mxu0 0.0
    %169 = vmatprep.subr.mxu0 0.0
    %170 = vmatpush1.msra.mxu0 0.0
    %171 = vmatprep.subr.mxu0 0.0
    %172 = vmatpush1.msra.mxu0 0.0
    %173 = vmatprep.subr.mxu0 0.0
    %174 = vmatpush1.msra.mxu0 0.0
    %175 = vmatprep.subr.mxu0 0.0
    %176 = vmatpush1.msra.mxu0 0.0
    %177 = vmatprep.subr.mxu0 0.0
    %178 = vmatpush1.msra.mxu0 0.0
    %179 = vmatprep.subr.mxu0 0.0
    %180 = vmatpush1.msra.mxu0 0.0
    %181 = vmatprep.subr.mxu0 0.0
    %182 = vmatpush1.msra.mxu0 0.0
    %183 = vmatprep.mubr.f32.mxu0 0.0
    %184 = vmatmul.mubr.f32.gmra.mrb[0].mxu0 %v87
    %v185 = vpop.f32.mrb[0].mxu0
    %v186 = vadd.f32 %v64, %v185
    %v187 = vpop.f32.mrb[0].mxu0
    %v188 = vadd.f32 %v68, %v187
    %189 = vmatprep.mubr.f32.mxu0 0.0
    %190 = vmatmul.mubr.f32.gmra.mrb[0].mxu0 %v90
    %v191 = vpop.f32.mrb[0].mxu0
    %v192 = vadd.f32 %v64, %v191
    %v193 = vpop.f32.mrb[0].mxu0
    %v194 = vadd.f32 %v68, %v193
    %195 = vmatprep.mubr.f32.mxu0 0.0
    %196 = vmatmul.mubr.f32.gmra.mrb[0].mxu0 %v93
    %v197 = vpop.f32.mrb[0].mxu0
    %v198 = vadd.f32 %v64, %v197
    %v199 = vpop.f32.mrb[0].mxu0
    %v200 = vadd.f32 %v68, %v199
    %201 = vmatprep.mubr.f32.mxu0 0.0
    %202 = vmatmul.mubr.f32.gmra.mrb[0].mxu0 %v96
    %v203 = vpop.f32.mrb[0].mxu0
    %v204 = vadd.f32 %v64, %v203
    %v205 = vpop.f32.mrb[0].mxu0
    %v206 = vadd.f32 %v68, %v205
    %207 = vmatprep.mubr.f32.mxu0 0.0
    %208 = vmatmul.mubr.f32.gmra.mrb[0].mxu0 %v99
    %v209 = vpop.f32.mrb[0].mxu0
    %v210 = vadd.f32 %v64, %v209
    %v211 = vpop.f32.mrb[0].mxu0
    %v212 = vadd.f32 %v68, %v211
    %213 = vmatprep.mubr.f32.mxu0 0.0
    %214 = vmatmul.mubr.f32.gmra.mrb[0].mxu0 %v102
    %v215 = vpop.f32.mrb[0].mxu0
    %v216 = vadd.f32 %v64, %v215
    %v217 = vpop.f32.mrb[0].mxu0
    %v218 = vadd.f32 %v68, %v217
    %219 = vmatprep.mubr.f32.mxu0 0.0
    %220 = vmatmul.mubr.f32.gmra.mrb[0].mxu0 %v105
    %v221 = vpop.f32.mrb[0].mxu0
    %v222 = vadd.f32 %v64, %v221
    %v223 = vpop.f32.mrb[0].mxu0
    %v224 = vadd.f32 %v68, %v223
    %225 = vmatprep.mubr.f32.mxu0 0.0
    %226 = vmatmul.mubr.f32.gmra.mrb[0].mxu0 %v108
    %v227 = vpop.f32.mrb[0].mxu0
    %v228 = vadd.f32 %v64, %v227
    %v229 = vpop.f32.mrb[0].mxu0
    %v230 = vadd.f32 %v68, %v229
    %231 = vdwg.mxu0
    %232 = vmatprep.subr.mxu0 %v117
    %233 = vmatpush1.msra.mxu0 %v115
    %234 = vmatprep.subr.mxu0 0.0
    %235 = vmatpush1.msra.mxu0 0.0
    %236 = vmatprep.subr.mxu0 0.0
    %237 = vmatpush1.msra.mxu0 0.0
    %238 = vmatprep.subr.mxu0 0.0
    %239 = vmatpush1.msra.mxu0 0.0
    %240 = vmatprep.subr.mxu0 0.0
    %241 = vmatpush1.msra.mxu0 0.0
    %242 = vmatprep.subr.mxu0 0.0
    %243 = vmatpush1.msra.mxu0 0.0
    %244 = vmatprep.subr.mxu0 0.0
    %245 = vmatpush1.msra.mxu0 0.0
    %246 = vmatprep.subr.mxu0 0.0
    %247 = vmatpush1.msra.mxu0 0.0
    %248 = vmatprep.subr.mxu0 0.0
    %249 = vmatpush1.msra.mxu0 0.0
    %250 = vmatprep.subr.mxu0 0.0
    %251 = vmatpush1.msra.mxu0 0.0
    %252 = vmatprep.subr.mxu0 0.0
    %253 = vmatpush1.msra.mxu0 0.0
    %254 = vmatprep.subr.mxu0 0.0
    %255 = vmatpush1.msra.mxu0 0.0
    %256 = vmatprep.subr.mxu0 0.0
    %257 = vmatpush1.msra.mxu0 0.0
    %258 = vmatprep.subr.mxu0 0.0
    %259 = vmatpush1.msra.mxu0 0.0
    %260 = vmatprep.subr.mxu0 0.0
    %261 = vmatpush1.msra.mxu0 0.0
    %262 = vmatprep.subr.mxu0 0.0
    %263 = vmatpush1.msra.mxu0 0.0
    %264 = vmatprep.subr.mxu0 0.0
    %265 = vmatpush1.msra.mxu0 0.0
    %266 = vmatprep.subr.mxu0 0.0
    %267 = vmatpush1.msra.mxu0 0.0
    %268 = vmatprep.subr.mxu0 0.0
    %269 = vmatpush1.msra.mxu0 0.0
    %270 = vmatprep.subr.mxu0 0.0
    %271 = vmatpush1.msra.mxu0 0.0
    %272 = vmatprep.subr.mxu0 0.0
    %273 = vmatpush1.msra.mxu0 0.0
    %274 = vmatprep.subr.mxu0 0.0
    %275 = vmatpush1.msra.mxu0 0.0
    %276 = vmatprep.subr.mxu0 0.0
    %277 = vmatpush1.msra.mxu0 0.0
    %278 = vmatprep.subr.mxu0 0.0
    %279 = vmatpush1.msra.mxu0 0.0
    %280 = vmatprep.subr.mxu0 0.0
    %281 = vmatpush1.msra.mxu0 0.0
    %282 = vmatprep.subr.mxu0 0.0
    %283 = vmatpush1.msra.mxu0 0.0
    %284 = vmatprep.subr.mxu0 0.0
    %285 = vmatpush1.msra.mxu0 0.0
    %286 = vmatprep.subr.mxu0 0.0
    %287 = vmatpush1.msra.mxu0 0.0
    %288 = vmatprep.subr.mxu0 0.0
    %289 = vmatpush1.msra.mxu0 0.0
    %290 = vmatprep.subr.mxu0 0.0
    %291 = vmatpush1.msra.mxu0 0.0
    %292 = vmatprep.subr.mxu0 0.0
    %293 = vmatpush1.msra.mxu0 0.0
    %294 = vmatprep.subr.mxu0 0.0
    %295 = vmatpush1.msra.mxu0 0.0
    %296 = vmatprep.mubr.f32.mxu0 0.0
    %297 = vmatmul.mubr.f32.gmra.mrb[0].mxu0 %v87
    %v298 = vpop.f32.mrb[0].mxu0
    %v299 = vadd.f32 %v72, %v298
    %v300 = vpop.f32.mrb[0].mxu0
    %v301 = vadd.f32 %v76, %v300
    %302 = vmatprep.mubr.f32.mxu0 0.0
    %303 = vmatmul.mubr.f32.gmra.mrb[0].mxu0 %v90
    %v304 = vpop.f32.mrb[0].mxu0
    %v305 = vadd.f32 %v72, %v304
    %v306 = vpop.f32.mrb[0].mxu0
    %v307 = vadd.f32 %v76, %v306
    %308 = vmatprep.mubr.f32.mxu0 0.0
    %309 = vmatmul.mubr.f32.gmra.mrb[0].mxu0 %v93
    %v310 = vpop.f32.mrb[0].mxu0
    %v311 = vadd.f32 %v72, %v310
    %v312 = vpop.f32.mrb[0].mxu0
    %v313 = vadd.f32 %v76, %v312
    %314 = vmatprep.mubr.f32.mxu0 0.0
    %315 = vmatmul.mubr.f32.gmra.mrb[0].mxu0 %v96
    %v316 = vpop.f32.mrb[0].mxu0
    %v317 = vadd.f32 %v72, %v316
    %v318 = vpop.f32.mrb[0].mxu0
    %v319 = vadd.f32 %v76, %v318
    %320 = vmatprep.mubr.f32.mxu0 0.0
    %321 = vmatmul.mubr.f32.gmra.mrb[0].mxu0 %v99
    %v322 = vpop.f32.mrb[0].mxu0
    %v323 = vadd.f32 %v72, %v322
    %v324 = vpop.f32.mrb[0].mxu0
    %v325 = vadd.f32 %v76, %v324
    %326 = vmatprep.mubr.f32.mxu0 0.0
    %327 = vmatmul.mubr.f32.gmra.mrb[0].mxu0 %v102
    %v328 = vpop.f32.mrb[0].mxu0
    %v329 = vadd.f32 %v72, %v328
    %v330 = vpop.f32.mrb[0].mxu0
    %v331 = vadd.f32 %v76, %v330
    %332 = vmatprep.mubr.f32.mxu0 0.0
    %333 = vmatmul.mubr.f32.gmra.mrb[0].mxu0 %v105
    %v334 = vpop.f32.mrb[0].mxu0
    %v335 = vadd.f32 %v72, %v334
    %v336 = vpop.f32.mrb[0].mxu0
    %v337 = vadd.f32 %v76, %v336
    %338 = vmatprep.mubr.f32.mxu0 0.0
    %339 = vmatmul.mubr.f32.gmra.mrb[0].mxu0 %v108
    %v340 = vpop.f32.mrb[0].mxu0
    %v341 = vadd.f32 %v72, %v340
    %v342 = vpop.f32.mrb[0].mxu0
    %v343 = vadd.f32 %v76, %v342
    %344 = vdwg.mxu0
    %345 = vst [vmem:[#allocation2] sm:$0xff] %v186
    %346 = vst [vmem:[#allocation2 + $0x8] sm:$0xff] %v188
    %347 = vst [vmem:[#allocation2 + $0x10] sm:$0xff] %v299
    %348 = vst [vmem:[#allocation2 + $0x18] sm:$0xff] %v301
    %349 = vst [vmem:[#allocation2 + $0x20] sm:$0xff] %v192
    %350 = vst [vmem:[#allocation2 + $0x28] sm:$0xff] %v194
    %351 = vst [vmem:[#allocation2 + $0x30] sm:$0xff] %v305
    %352 = vst [vmem:[#allocation2 + $0x38] sm:$0xff] %v307
    %353 = vst [vmem:[#allocation2 + $0x40] sm:$0xff] %v198
    %354 = vst [vmem:[#allocation2 + $0x48] sm:$0xff] %v200
    %355 = vst [vmem:[#allocation2 + $0x50] sm:$0xff] %v311
    %356 = vst [vmem:[#allocation2 + $0x58] sm:$0xff] %v313
    %357 = vst [vmem:[#allocation2 + $0x60] sm:$0xff] %v204
    %358 = vst [vmem:[#allocation2 + $0x68] sm:$0xff] %v206
    %359 = vst [vmem:[#allocation2 + $0x70] sm:$0xff] %v317
    %360 = vst [vmem:[#allocation2 + $0x78] sm:$0xff] %v319
    %361 = vst [vmem:[#allocation2 + $0x80] sm:$0xff] %v210
    %362 = vst [vmem:[#allocation2 + $0x88] sm:$0xff] %v212
    %363 = vst [vmem:[#allocation2 + $0x90] sm:$0xff] %v323
    %364 = vst [vmem:[#allocation2 + $0x98] sm:$0xff] %v325
    %365 = vst [vmem:[#allocation2 + $0xa0] sm:$0xff] %v216
    %366 = vst [vmem:[#allocation2 + $0xa8] sm:$0xff] %v218
    %367 = vst [vmem:[#allocation2 + $0xb0] sm:$0xff] %v329
    %368 = vst [vmem:[#allocation2 + $0xb8] sm:$0xff] %v331
    %369 = vst [vmem:[#allocation2 + $0xc0] sm:$0xff] %v222
    %370 = vst [vmem:[#allocation2 + $0xc8] sm:$0xff] %v224
    %371 = vst [vmem:[#allocation2 + $0xd0] sm:$0xff] %v335
    %372 = vst [vmem:[#allocation2 + $0xd8] sm:$0xff] %v337
    %373 = vst [vmem:[#allocation2 + $0xe0] sm:$0xff] %v228
    %374 = vst [vmem:[#allocation2 + $0xe8] sm:$0xff] %v230
    %375 = vst [vmem:[#allocation2 + $0xf0] sm:$0xff] %v341
    %376 = vst [vmem:[#allocation2 + $0xf8] sm:$0xff] %v343
    %v377 = vld [vmem:[#allocation5] sm:$0xff]
    %v378 = vld [vmem:[#allocation5 + $0x8] sm:$0xff]
    %v379 = vld [vmem:[#allocation5 + $0x10] sm:$0xff]
    %v380 = vld [vmem:[#allocation5 + $0x18] sm:$0xff]
    %v381 = vld [vmem:[#allocation5 + $0x20] sm:$0xff]
    %v382 = vld [vmem:[#allocation5 + $0x28] sm:$0xff]
    %v383 = vld [vmem:[#allocation5 + $0x30] sm:$0xff]
    %v384 = vld [vmem:[#allocation5 + $0x38] sm:$0xff]
    %v385 = vld [vmem:[#allocation5 + $0x40] sm:$0xff]
    %v386 = vld [vmem:[#allocation5 + $0x48] sm:$0xff]
    %v387 = vld [vmem:[#allocation5 + $0x50] sm:$0xff]
    %v388 = vld [vmem:[#allocation5 + $0x58] sm:$0xff]
    %v389 = vld [vmem:[#allocation5 + $0x60] sm:$0xff]
    %v390 = vld [vmem:[#allocation5 + $0x68] sm:$0xff]
    %v391 = vld [vmem:[#allocation5 + $0x70] sm:$0xff]
    %v392 = vld [vmem:[#allocation5 + $0x78] sm:$0xff]
    %v393 = vld [vmem:[#allocation5 + $0x80] sm:$0xff]
    %v394 = vld [vmem:[#allocation5 + $0x88] sm:$0xff]
    %v395 = vld [vmem:[#allocation5 + $0x90] sm:$0xff]
    %v396 = vld [vmem:[#allocation5 + $0x98] sm:$0xff]
    %v397 = vld [vmem:[#allocation5 + $0xa0] sm:$0xff]
    %v398 = vld [vmem:[#allocation5 + $0xa8] sm:$0xff]
    %v399 = vld [vmem:[#allocation5 + $0xb0] sm:$0xff]
    %v400 = vld [vmem:[#allocation5 + $0xb8] sm:$0xff]
    %v401 = vld [vmem:[#allocation5 + $0xc0] sm:$0xff]
    %v402 = vld [vmem:[#allocation5 + $0xc8] sm:$0xff]
    %v403 = vld [vmem:[#allocation5 + $0xd0] sm:$0xff]
    %v404 = vld [vmem:[#allocation5 + $0xd8] sm:$0xff]
    %v405 = vld [vmem:[#allocation5 + $0xe0] sm:$0xff]
    %v406 = vld [vmem:[#allocation5 + $0xe8] sm:$0xff]
    %v407 = vld [vmem:[#allocation5 + $0xf0] sm:$0xff]
    %v408 = vld [vmem:[#allocation5 + $0xf8] sm:$0xff]
    %v409 = vld [vmem:[#allocation5 + $0x100] sm:$0xff]
    %v410 = vld [vmem:[#allocation5 + $0x108] sm:$0xff]
    %v411 = vld [vmem:[#allocation5 + $0x110] sm:$0xff]
    %v412 = vld [vmem:[#allocation5 + $0x118] sm:$0xff]
    %v413 = vld [vmem:[#allocation5 + $0x120] sm:$0xff]
    %v414 = vld [vmem:[#allocation5 + $0x128] sm:$0xff]
    %v415 = vld [vmem:[#allocation5 + $0x130] sm:$0xff]
    %v416 = vld [vmem:[#allocation5 + $0x138] sm:$0xff]
    %v417 = vld [vmem:[#allocation5 + $0x140] sm:$0xff]
    %v418 = vld [vmem:[#allocation5 + $0x148] sm:$0xff]
    %v419 = vld [vmem:[#allocation5 + $0x150] sm:$0xff]
    %v420 = vld [vmem:[#allocation5 + $0x158] sm:$0xff]
    %v421 = vld [vmem:[#allocation5 + $0x160] sm:$0xff]
    %v422 = vld [vmem:[#allocation5 + $0x168] sm:$0xff]
    %v423 = vld [vmem:[#allocation5 + $0x170] sm:$0xff]
    %v424 = vld [vmem:[#allocation5 + $0x178] sm:$0xff]
    %v425 = vld [vmem:[#allocation5 + $0x180] sm:$0xff]
    %v426 = vld [vmem:[#allocation5 + $0x188] sm:$0xff]
    %v427 = vld [vmem:[#allocation5 + $0x190] sm:$0xff]
    %v428 = vld [vmem:[#allocation5 + $0x198] sm:$0xff]
    %v429 = vld [vmem:[#allocation5 + $0x1a0] sm:$0xff]
    %v430 = vld [vmem:[#allocation5 + $0x1a8] sm:$0xff]
    %v431 = vld [vmem:[#allocation5 + $0x1b0] sm:$0xff]
    %v432 = vld [vmem:[#allocation5 + $0x1b8] sm:$0xff]
    %v433 = vld [vmem:[#allocation5 + $0x1c0] sm:$0xff]
    %v434 = vld [vmem:[#allocation5 + $0x1c8] sm:$0xff]
    %v435 = vld [vmem:[#allocation5 + $0x1d0] sm:$0xff]
    %v436 = vld [vmem:[#allocation5 + $0x1d8] sm:$0xff]
    %v437 = vld [vmem:[#allocation5 + $0x1e0] sm:$0xff]
    %v438 = vld [vmem:[#allocation5 + $0x1e8] sm:$0xff]
    %v439 = vld [vmem:[#allocation5 + $0x1f0] sm:$0xff]
    %v440 = vld [vmem:[#allocation5 + $0x1f8] sm:$0xff]
    %v441 = vld [vmem:[#allocation3] sm:$0xff]
    %v442 = vld [vmem:[#allocation4] sm:$0xff]
    %v443 = vld [vmem:[#allocation2] sm:$0xff]
    %v444 = vld [vmem:[#allocation2 + $0x8] sm:$0xff]
    %v445 = vld [vmem:[#allocation2 + $0x10] sm:$0xff]
    %v446 = vld [vmem:[#allocation2 + $0x18] sm:$0xff]
    %447 = vmatprep.subr.mxu0 %v378
    %448 = vmatpush1.msra.mxu0 %v377
    %449 = vmatprep.subr.mxu0 %v382
    %450 = vmatpush1.msra.mxu0 %v381
    %451 = vmatprep.subr.mxu0 %v386
    %452 = vmatpush1.msra.mxu0 %v385
    %453 = vmatprep.subr.mxu0 %v390
    %454 = vmatpush1.msra.mxu0 %v389
    %455 = vmatprep.subr.mxu0 %v394
    %456 = vmatpush1.msra.mxu0 %v393
    %457 = vmatprep.subr.mxu0 %v398
    %458 = vmatpush1.msra.mxu0 %v397
    %459 = vmatprep.subr.mxu0 %v402
    %460 = vmatpush1.msra.mxu0 %v401
    %461 = vmatprep.subr.mxu0 %v406
    %462 = vmatpush1.msra.mxu0 %v405
    %463 = vmatprep.subr.mxu0 %v410
    %464 = vmatpush1.msra.mxu0 %v409
    %465 = vmatprep.subr.mxu0 %v414
    %466 = vmatpush1.msra.mxu0 %v413
    %467 = vmatprep.subr.mxu0 %v418
    %468 = vmatpush1.msra.mxu0 %v417
    %469 = vmatprep.subr.mxu0 %v422
    %470 = vmatpush1.msra.mxu0 %v421
    %471 = vmatprep.subr.mxu0 %v426
    %472 = vmatpush1.msra.mxu0 %v425
    %473 = vmatprep.subr.mxu0 %v430
    %474 = vmatpush1.msra.mxu0 %v429
    %475 = vmatprep.subr.mxu0 %v434
    %476 = vmatpush1.msra.mxu0 %v433
    %477 = vmatprep.subr.mxu0 %v438
    %478 = vmatpush1.msra.mxu0 %v437
    %479 = vmatprep.subr.mxu0 0.0
    %480 = vmatpush1.msra.mxu0 0.0
    %481 = vmatprep.subr.mxu0 0.0
    %482 = vmatpush1.msra.mxu0 0.0
    %483 = vmatprep.subr.mxu0 0.0
    %484 = vmatpush1.msra.mxu0 0.0
    %485 = vmatprep.subr.mxu0 0.0
    %486 = vmatpush1.msra.mxu0 0.0
    %487 = vmatprep.subr.mxu0 0.0
    %488 = vmatpush1.msra.mxu0 0.0
    %489 = vmatprep.subr.mxu0 0.0
    %490 = vmatpush1.msra.mxu0 0.0
    %491 = vmatprep.subr.mxu0 0.0
    %492 = vmatpush1.msra.mxu0 0.0
    %493 = vmatprep.subr.mxu0 0.0
    %494 = vmatpush1.msra.mxu0 0.0
    %495 = vmatprep.subr.mxu0 0.0
    %496 = vmatpush1.msra.mxu0 0.0
    %497 = vmatprep.subr.mxu0 0.0
    %498 = vmatpush1.msra.mxu0 0.0
    %499 = vmatprep.subr.mxu0 0.0
    %500 = vmatpush1.msra.mxu0 0.0
    %501 = vmatprep.subr.mxu0 0.0
    %502 = vmatpush1.msra.mxu0 0.0
    %503 = vmatprep.subr.mxu0 0.0
    %504 = vmatpush1.msra.mxu0 0.0
    %505 = vmatprep.subr.mxu0 0.0
    %506 = vmatpush1.msra.mxu0 0.0
    %507 = vmatprep.subr.mxu0 0.0
    %508 = vmatpush1.msra.mxu0 0.0
    %509 = vmatprep.subr.mxu0 0.0
    %510 = vmatpush1.msra.mxu0 0.0
    %511 = vmatprep.mubr.f32.mxu0 0.0
    %512 = vmatmul.mubr.f32.gmra.mrb[0].mxu0 %v441
    %v513 = vpop.f32.mrb[0].mxu0
    %v514 = vadd.f32 0.0, %v513
    %v515 = vpop.f32.mrb[0].mxu0
    %v516 = vadd.f32 0.0, %v515
    %517 = vdwg.mxu0
    %518 = vmatprep.subr.mxu0 %v380
    %519 = vmatpush1.msra.mxu0 %v379
    %520 = vmatprep.subr.mxu0 %v384
    %521 = vmatpush1.msra.mxu0 %v383
    %522 = vmatprep.subr.mxu0 %v388
    %523 = vmatpush1.msra.mxu0 %v387
    %524 = vmatprep.subr.mxu0 %v392
    %525 = vmatpush1.msra.mxu0 %v391
    %526 = vmatprep.subr.mxu0 %v396
    %527 = vmatpush1.msra.mxu0 %v395
    %528 = vmatprep.subr.mxu0 %v400
    %529 = vmatpush1.msra.mxu0 %v399
    %530 = vmatprep.subr.mxu0 %v404
    %531 = vmatpush1.msra.mxu0 %v403
    %532 = vmatprep.subr.mxu0 %v408
    %533 = vmatpush1.msra.mxu0 %v407
    %534 = vmatprep.subr.mxu0 %v412
    %535 = vmatpush1.msra.mxu0 %v411
    %536 = vmatprep.subr.mxu0 %v416
    %537 = vmatpush1.msra.mxu0 %v415
    %538 = vmatprep.subr.mxu0 %v420
    %539 = vmatpush1.msra.mxu0 %v419
    %540 = vmatprep.subr.mxu0 %v424
    %541 = vmatpush1.msra.mxu0 %v423
    %542 = vmatprep.subr.mxu0 %v428
    %543 = vmatpush1.msra.mxu0 %v427
    %544 = vmatprep.subr.mxu0 %v432
    %545 = vmatpush1.msra.mxu0 %v431
    %546 = vmatprep.subr.mxu0 %v436
    %547 = vmatpush1.msra.mxu0 %v435
    %548 = vmatprep.subr.mxu0 %v440
    %549 = vmatpush1.msra.mxu0 %v439
    %550 = vmatprep.subr.mxu0 0.0
    %551 = vmatpush1.msra.mxu0 0.0
    %552 = vmatprep.subr.mxu0 0.0
    %553 = vmatpush1.msra.mxu0 0.0
    %554 = vmatprep.subr.mxu0 0.0
    %555 = vmatpush1.msra.mxu0 0.0
    %556 = vmatprep.subr.mxu0 0.0
    %557 = vmatpush1.msra.mxu0 0.0
    %558 = vmatprep.subr.mxu0 0.0
    %559 = vmatpush1.msra.mxu0 0.0
    %560 = vmatprep.subr.mxu0 0.0
    %561 = vmatpush1.msra.mxu0 0.0
    %562 = vmatprep.subr.mxu0 0.0
    %563 = vmatpush1.msra.mxu0 0.0
    %564 = vmatprep.subr.mxu0 0.0
    %565 = vmatpush1.msra.mxu0 0.0
    %566 = vmatprep.subr.mxu0 0.0
    %567 = vmatpush1.msra.mxu0 0.0
    %568 = vmatprep.subr.mxu0 0.0
    %569 = vmatpush1.msra.mxu0 0.0
    %570 = vmatprep.subr.mxu0 0.0
    %571 = vmatpush1.msra.mxu0 0.0
    %572 = vmatprep.subr.mxu0 0.0
    %573 = vmatpush1.msra.mxu0 0.0
    %574 = vmatprep.subr.mxu0 0.0
    %575 = vmatpush1.msra.mxu0 0.0
    %576 = vmatprep.subr.mxu0 0.0
    %577 = vmatpush1.msra.mxu0 0.0
    %578 = vmatprep.subr.mxu0 0.0
    %579 = vmatpush1.msra.mxu0 0.0
    %580 = vmatprep.subr.mxu0 0.0
    %581 = vmatpush1.msra.mxu0 0.0
    %582 = vmatprep.mubr.f32.mxu0 0.0
    %583 = vmatmul.mubr.f32.gmra.mrb[0].mxu0 %v441
    %v584 = vpop.f32.mrb[0].mxu0
    %v585 = vadd.f32 0.0, %v584
    %v586 = vpop.f32.mrb[0].mxu0
    %v587 = vadd.f32 0.0, %v586
    %588 = vdwg.mxu0
    %v589 = vadd.f32 %v443, %v514
    %v590 = vadd.f32 %v444, %v516
    %v591 = vadd.f32 %v445, %v585
    %v592 = vadd.f32 %v446, %v587
    %v593 = vmul.f32 %v589, 0.5
    %v594 = vtanh.pop %v593
    %v595 = vadd.f32 %v594, 1.0
    %v596 = vmul.f32 %v595, 0.5
    %v597 = vmul.f32 %v590, 0.5
    %v598 = vtanh.pop %v597
    %v599 = vadd.f32 %v598, 1.0
    %v600 = vmul.f32 %v599, 0.5
    %v601 = vtanh.pop %v591
    %v602 = vmul.f32 %v592, 0.5
    %v603 = vtanh.pop %v602
    %v604 = vadd.f32 %v603, 1.0
    %v605 = vmul.f32 %v604, 0.5
    %v606 = vmul.f32 %v600, %v442
    %v607 = vmul.f32 %v596, %v601
    %v608 = vadd.f32 %v606, %v607
    %v609 = vtanh.pop %v608
    %v610 = vmul.f32 %v605, %v609
    %611 = vst [vmem:[#allocation8] sm:$0xff] %v610
    %s612 = scalar_lea.vmem [#allocation2], 32
    %v613 = vld [vmem:[%s612] sm:$0xff]
    %v614 = vld [vmem:[%s612 + $0x8] sm:$0xff]
    %v615 = vld [vmem:[%s612 + $0x10] sm:$0xff]
    %v616 = vld [vmem:[%s612 + $0x18] sm:$0xff]
    %617 = vmatprep.subr.mxu0 %v378
    %618 = vmatpush1.msra.mxu0 %v377
    %619 = vmatprep.subr.mxu0 %v382
    %620 = vmatpush1.msra.mxu0 %v381
    %621 = vmatprep.subr.mxu0 %v386
    %622 = vmatpush1.msra.mxu0 %v385
    %623 = vmatprep.subr.mxu0 %v390
    %624 = vmatpush1.msra.mxu0 %v389
    %625 = vmatprep.subr.mxu0 %v394
    %626 = vmatpush1.msra.mxu0 %v393
    %627 = vmatprep.subr.mxu0 %v398
    %628 = vmatpush1.msra.mxu0 %v397
    %629 = vmatprep.subr.mxu0 %v402
    %630 = vmatpush1.msra.mxu0 %v401
    %631 = vmatprep.subr.mxu0 %v406
    %632 = vmatpush1.msra.mxu0 %v405
    %633 = vmatprep.subr.mxu0 %v410
    %634 = vmatpush1.msra.mxu0 %v409
    %635 = vmatprep.subr.mxu0 %v414
    %636 = vmatpush1.msra.mxu0 %v413
    %637 = vmatprep.subr.mxu0 %v418
    %638 = vmatpush1.msra.mxu0 %v417
    %639 = vmatprep.subr.mxu0 %v422
    %640 = vmatpush1.msra.mxu0 %v421
    %641 = vmatprep.subr.mxu0 %v426
    %642 = vmatpush1.msra.mxu0 %v425
    %643 = vmatprep.subr.mxu0 %v430
    %644 = vmatpush1.msra.mxu0 %v429
    %645 = vmatprep.subr.mxu0 %v434
    %646 = vmatpush1.msra.mxu0 %v433
    %647 = vmatprep.subr.mxu0 %v438
    %648 = vmatpush1.msra.mxu0 %v437
    %649 = vmatprep.subr.mxu0 0.0
    %650 = vmatpush1.msra.mxu0 0.0
    %651 = vmatprep.subr.mxu0 0.0
    %652 = vmatpush1.msra.mxu0 0.0
    %653 = vmatprep.subr.mxu0 0.0
    %654 = vmatpush1.msra.mxu0 0.0
    %655 = vmatprep.subr.mxu0 0.0
    %656 = vmatpush1.msra.mxu0 0.0
    %657 = vmatprep.subr.mxu0 0.0
    %658 = vmatpush1.msra.mxu0 0.0
    %659 = vmatprep.subr.mxu0 0.0
    %660 = vmatpush1.msra.mxu0 0.0
    %661 = vmatprep.subr.mxu0 0.0
    %662 = vmatpush1.msra.mxu0 0.0
    %663 = vmatprep.subr.mxu0 0.0
    %664 = vmatpush1.msra.mxu0 0.0
    %665 = vmatprep.subr.mxu0 0.0
    %666 = vmatpush1.msra.mxu0 0.0
    %667 = vmatprep.subr.mxu0 0.0
    %668 = vmatpush1.msra.mxu0 0.0
    %669 = vmatprep.subr.mxu0 0.0
    %670 = vmatpush1.msra.mxu0 0.0
    %671 = vmatprep.subr.mxu0 0.0
    %672 = vmatpush1.msra.mxu0 0.0
    %673 = vmatprep.subr.mxu0 0.0
    %674 = vmatpush1.msra.mxu0 0.0
    %675 = vmatprep.subr.mxu0 0.0
    %676 = vmatpush1.msra.mxu0 0.0
    %677 = vmatprep.subr.mxu0 0.0
    %678 = vmatpush1.msra.mxu0 0.0
    %679 = vmatprep.subr.mxu0 0.0
    %680 = vmatpush1.msra.mxu0 0.0
    %681 = vmatprep.mubr.f32.mxu0 0.0
    %682 = vmatmul.mubr.f32.gmra.mrb[0].mxu0 %v610
    %v683 = vpop.f32.mrb[0].mxu0
    %v684 = vadd.f32 0.0, %v683
    %v685 = vpop.f32.mrb[0].mxu0
    %v686 = vadd.f32 0.0, %v685
    %687 = vdwg.mxu0
    %688 = vmatprep.subr.mxu0 %v380
    %689 = vmatpush1.msra.mxu0 %v379
    %690 = vmatprep.subr.mxu0 %v384
    %691 = vmatpush1.msra.mxu0 %v383
    %692 = vmatprep.subr.mxu0 %v388
    %693 = vmatpush1.msra.mxu0 %v387
    %694 = vmatprep.subr.mxu0 %v392
    %695 = vmatpush1.msra.mxu0 %v391
    %696 = vmatprep.subr.mxu0 %v396
    %697 = vmatpush1.msra.mxu0 %v395
    %698 = vmatprep.subr.mxu0 %v400
    %699 = vmatpush1.msra.mxu0 %v399
    %700 = vmatprep.subr.mxu0 %v404
    %701 = vmatpush1.msra.mxu0 %v403
    %702 = vmatprep.subr.mxu0 %v408
    %703 = vmatpush1.msra.mxu0 %v407
    %704 = vmatprep.subr.mxu0 %v412
    %705 = vmatpush1.msra.mxu0 %v411
    %706 = vmatprep.subr.mxu0 %v416
    %707 = vmatpush1.msra.mxu0 %v415
    %708 = vmatprep.subr.mxu0 %v420
    %709 = vmatpush1.msra.mxu0 %v419
    %710 = vmatprep.subr.mxu0 %v424
    %711 = vmatpush1.msra.mxu0 %v423
    %712 = vmatprep.subr.mxu0 %v428
    %713 = vmatpush1.msra.mxu0 %v427
    %714 = vmatprep.subr.mxu0 %v432
    %715 = vmatpush1.msra.mxu0 %v431
    %716 = vmatprep.subr.mxu0 %v436
    %717 = vmatpush1.msra.mxu0 %v435
    %718 = vmatprep.subr.mxu0 %v440
    %719 = vmatpush1.msra.mxu0 %v439
    %720 = vmatprep.subr.mxu0 0.0
    %721 = vmatpush1.msra.mxu0 0.0
    %722 = vmatprep.subr.mxu0 0.0
    %723 = vmatpush1.msra.mxu0 0.0
    %724 = vmatprep.subr.mxu0 0.0
    %725 = vmatpush1.msra.mxu0 0.0
    %726 = vmatprep.subr.mxu0 0.0
    %727 = vmatpush1.msra.mxu0 0.0
    %728 = vmatprep.subr.mxu0 0.0
    %729 = vmatpush1.msra.mxu0 0.0
    %730 = vmatprep.subr.mxu0 0.0
    %731 = vmatpush1.msra.mxu0 0.0
    %732 = vmatprep.subr.mxu0 0.0
    %733 = vmatpush1.msra.mxu0 0.0
    %734 = vmatprep.subr.mxu0 0.0
    %735 = vmatpush1.msra.mxu0 0.0
    %736 = vmatprep.subr.mxu0 0.0
    %737 = vmatpush1.msra.mxu0 0.0
    %738 = vmatprep.subr.mxu0 0.0
    %739 = vmatpush1.msra.mxu0 0.0
    %740 = vmatprep.subr.mxu0 0.0
    %741 = vmatpush1.msra.mxu0 0.0
    %742 = vmatprep.subr.mxu0 0.0
    %743 = vmatpush1.msra.mxu0 0.0
    %744 = vmatprep.subr.mxu0 0.0
    %745 = vmatpush1.msra.mxu0 0.0
    %746 = vmatprep.subr.mxu0 0.0
    %747 = vmatpush1.msra.mxu0 0.0
    %748 = vmatprep.subr.mxu0 0.0
    %749 = vmatpush1.msra.mxu0 0.0
    %750 = vmatprep.subr.mxu0 0.0
    %751 = vmatpush1.msra.mxu0 0.0
    %752 = vmatprep.mubr.f32.mxu0 0.0
    %753 = vmatmul.mubr.f32.gmra.mrb[0].mxu0 %v610
    %v754 = vpop.f32.mrb[0].mxu0
    %v755 = vadd.f32 0.0, %v754
    %v756 = vpop.f32.mrb[0].mxu0
    %v757 = vadd.f32 0.0, %v756
    %758 = vdwg.mxu0
    %v759 = vadd.f32 %v613, %v684
    %v760 = vadd.f32 %v614, %v686
    %v761 = vadd.f32 %v615, %v755
    %v762 = vadd.f32 %v616, %v757
    %v763 = vmul.f32 %v759, 0.5
    %v764 = vtanh.pop %v763
    %v765 = vadd.f32 %v764, 1.0
    %v766 = vmul.f32 %v765, 0.5
    %v767 = vmul.f32 %v760, 0.5
    %v768 = vtanh.pop %v767
    %v769 = vadd.f32 %v768, 1.0
    %v770 = vmul.f32 %v769, 0.5
    %v771 = vtanh.pop %v761
    %v772 = vmul.f32 %v762, 0.5
    %v773 = vtanh.pop %v772
    %v774 = vadd.f32 %v773, 1.0
    %v775 = vmul.f32 %v774, 0.5
    %v776 = vmul.f32 %v770, %v608
    %v777 = vmul.f32 %v766, %v771
    %v778 = vadd.f32 %v776, %v777
    %v779 = vtanh.pop %v778
    %v780 = vmul.f32 %v775, %v779
    %s781 = scalar_lea.vmem [#allocation8], 8
    %782 = vst [vmem:[%s781] sm:$0xff] %v780
    %s783 = scalar_lea.vmem [#allocation2], 64
    %v784 = vld [vmem:[%s783] sm:$0xff]
    %v785 = vld [vmem:[%s783 + $0x8] sm:$0xff]
    %v786 = vld [vmem:[%s783 + $0x10] sm:$0xff]
    %v787 = vld [vmem:[%s783 + $0x18] sm:$0xff]
    %788 = vmatprep.subr.mxu0 %v378
    %789 = vmatpush1.msra.mxu0 %v377
    %790 = vmatprep.subr.mxu0 %v382
    %791 = vmatpush1.msra.mxu0 %v381
    %792 = vmatprep.subr.mxu0 %v386
    %793 = vmatpush1.msra.mxu0 %v385
    %794 = vmatprep.subr.mxu0 %v390
    %795 = vmatpush1.msra.mxu0 %v389
    %796 = vmatprep.subr.mxu0 %v394
    %797 = vmatpush1.msra.mxu0 %v393
    %798 = vmatprep.subr.mxu0 %v398
    %799 = vmatpush1.msra.mxu0 %v397
    %800 = vmatprep.subr.mxu0 %v402
    %801 = vmatpush1.msra.mxu0 %v401
    %802 = vmatprep.subr.mxu0 %v406
    %803 = vmatpush1.msra.mxu0 %v405
    %804 = vmatprep.subr.mxu0 %v410
    %805 = vmatpush1.msra.mxu0 %v409
    %806 = vmatprep.subr.mxu0 %v414
    %807 = vmatpush1.msra.mxu0 %v413
    %808 = vmatprep.subr.mxu0 %v418
    %809 = vmatpush1.msra.mxu0 %v417
    %810 = vmatprep.subr.mxu0 %v422
    %811 = vmatpush1.msra.mxu0 %v421
    %812 = vmatprep.subr.mxu0 %v426
    %813 = vmatpush1.msra.mxu0 %v425
    %814 = vmatprep.subr.mxu0 %v430
    %815 = vmatpush1.msra.mxu0 %v429
    %816 = vmatprep.subr.mxu0 %v434
    %817 = vmatpush1.msra.mxu0 %v433
    %818 = vmatprep.subr.mxu0 %v438
    %819 = vmatpush1.msra.mxu0 %v437
    %820 = vmatprep.subr.mxu0 0.0
    %821 = vmatpush1.msra.mxu0 0.0
    %822 = vmatprep.subr.mxu0 0.0
    %823 = vmatpush1.msra.mxu0 0.0
    %824 = vmatprep.subr.mxu0 0.0
    %825 = vmatpush1.msra.mxu0 0.0
    %826 = vmatprep.subr.mxu0 0.0
    %827 = vmatpush1.msra.mxu0 0.0
    %828 = vmatprep.subr.mxu0 0.0
    %829 = vmatpush1.msra.mxu0 0.0
    %830 = vmatprep.subr.mxu0 0.0
    %831 = vmatpush1.msra.mxu0 0.0
    %832 = vmatprep.subr.mxu0 0.0
    %833 = vmatpush1.msra.mxu0 0.0
    %834 = vmatprep.subr.mxu0 0.0
    %835 = vmatpush1.msra.mxu0 0.0
    %836 = vmatprep.subr.mxu0 0.0
    %837 = vmatpush1.msra.mxu0 0.0
    %838 = vmatprep.subr.mxu0 0.0
    %839 = vmatpush1.msra.mxu0 0.0
    %840 = vmatprep.subr.mxu0 0.0
    %841 = vmatpush1.msra.mxu0 0.0
    %842 = vmatprep.subr.mxu0 0.0
    %843 = vmatpush1.msra.mxu0 0.0
    %844 = vmatprep.subr.mxu0 0.0
    %845 = vmatpush1.msra.mxu0 0.0
    %846 = vmatprep.subr.mxu0 0.0
    %847 = vmatpush1.msra.mxu0 0.0
    %848 = vmatprep.subr.mxu0 0.0
    %849 = vmatpush1.msra.mxu0 0.0
    %850 = vmatprep.subr.mxu0 0.0
    %851 = vmatpush1.msra.mxu0 0.0
    %852 = vmatprep.mubr.f32.mxu0 0.0
    %853 = vmatmul.mubr.f32.gmra.mrb[0].mxu0 %v780
    %v854 = vpop.f32.mrb[0].mxu0
    %v855 = vadd.f32 0.0, %v854
    %v856 = vpop.f32.mrb[0].mxu0
    %v857 = vadd.f32 0.0, %v856
    %858 = vdwg.mxu0
    %859 = vmatprep.subr.mxu0 %v380
    %860 = vmatpush1.msra.mxu0 %v379
    %861 = vmatprep.subr.mxu0 %v384
    %862 = vmatpush1.msra.mxu0 %v383
    %863 = vmatprep.subr.mxu0 %v388
    %864 = vmatpush1.msra.mxu0 %v387
    %865 = vmatprep.subr.mxu0 %v392
    %866 = vmatpush1.msra.mxu0 %v391
    %867 = vmatprep.subr.mxu0 %v396
    %868 = vmatpush1.msra.mxu0 %v395
    %869 = vmatprep.subr.mxu0 %v400
    %870 = vmatpush1.msra.mxu0 %v399
    %871 = vmatprep.subr.mxu0 %v404
    %872 = vmatpush1.msra.mxu0 %v403
    %873 = vmatprep.subr.mxu0 %v408
    %874 = vmatpush1.msra.mxu0 %v407
    %875 = vmatprep.subr.mxu0 %v412
    %876 = vmatpush1.msra.mxu0 %v411
    %877 = vmatprep.subr.mxu0 %v416
    %878 = vmatpush1.msra.mxu0 %v415
    %879 = vmatprep.subr.mxu0 %v420
    %880 = vmatpush1.msra.mxu0 %v419
    %881 = vmatprep.subr.mxu0 %v424
    %882 = vmatpush1.msra.mxu0 %v423
    %883 = vmatprep.subr.mxu0 %v428
    %884 = vmatpush1.msra.mxu0 %v427
    %885 = vmatprep.subr.mxu0 %v432
    %886 = vmatpush1.msra.mxu0 %v431
    %887 = vmatprep.subr.mxu0 %v436
    %888 = vmatpush1.msra.mxu0 %v435
    %889 = vmatprep.subr.mxu0 %v440
    %890 = vmatpush1.msra.mxu0 %v439
    %891 = vmatprep.subr.mxu0 0.0
    %892 = vmatpush1.msra.mxu0 0.0
    %893 = vmatprep.subr.mxu0 0.0
    %894 = vmatpush1.msra.mxu0 0.0
    %895 = vmatprep.subr.mxu0 0.0
    %896 = vmatpush1.msra.mxu0 0.0
    %897 = vmatprep.subr.mxu0 0.0
    %898 = vmatpush1.msra.mxu0 0.0
    %899 = vmatprep.subr.mxu0 0.0
    %900 = vmatpush1.msra.mxu0 0.0
    %901 = vmatprep.subr.mxu0 0.0
    %902 = vmatpush1.msra.mxu0 0.0
    %903 = vmatprep.subr.mxu0 0.0
    %904 = vmatpush1.msra.mxu0 0.0
    %905 = vmatprep.subr.mxu0 0.0
    %906 = vmatpush1.msra.mxu0 0.0
    %907 = vmatprep.subr.mxu0 0.0
    %908 = vmatpush1.msra.mxu0 0.0
    %909 = vmatprep.subr.mxu0 0.0
    %910 = vmatpush1.msra.mxu0 0.0
    %911 = vmatprep.subr.mxu0 0.0
    %912 = vmatpush1.msra.mxu0 0.0
    %913 = vmatprep.subr.mxu0 0.0
    %914 = vmatpush1.msra.mxu0 0.0
    %915 = vmatprep.subr.mxu0 0.0
    %916 = vmatpush1.msra.mxu0 0.0
    %917 = vmatprep.subr.mxu0 0.0
    %918 = vmatpush1.msra.mxu0 0.0
    %919 = vmatprep.subr.mxu0 0.0
    %920 = vmatpush1.msra.mxu0 0.0
    %921 = vmatprep.subr.mxu0 0.0
    %922 = vmatpush1.msra.mxu0 0.0
    %923 = vmatprep.mubr.f32.mxu0 0.0
    %924 = vmatmul.mubr.f32.gmra.mrb[0].mxu0 %v780
    %v925 = vpop.f32.mrb[0].mxu0
    %v926 = vadd.f32 0.0, %v925
    %v927 = vpop.f32.mrb[0].mxu0
    %v928 = vadd.f32 0.0, %v927
    %929 = vdwg.mxu0
    %v930 = vadd.f32 %v784, %v855
    %v931 = vadd.f32 %v785, %v857
    %v932 = vadd.f32 %v786, %v926
    %v933 = vadd.f32 %v787, %v928
    %v934 = vmul.f32 %v930, 0.5
    %v935 = vtanh.pop %v934
    %v936 = vadd.f32 %v935, 1.0
    %v937 = vmul.f32 %v936, 0.5
    %v938 = vmul.f32 %v931, 0.5
    %v939 = vtanh.pop %v938
    %v940 = vadd.f32 %v939, 1.0
    %v941 = vmul.f32 %v940, 0.5
    %v942 = vtanh.pop %v932
    %v943 = vmul.f32 %v933, 0.5
    %v944 = vtanh.pop %v943
    %v945 = vadd.f32 %v944, 1.0
    %v946 = vmul.f32 %v945, 0.5
    %v947 = vmul.f32 %v941, %v778
    %v948 = vmul.f32 %v937, %v942
    %v949 = vadd.f32 %v947, %v948
    %v950 = vtanh.pop %v949
    %v951 = vmul.f32 %v946, %v950
    %s952 = scalar_lea.vmem [#allocation8], 16
    %953 = vst [vmem:[%s952] sm:$0xff] %v951
    %s954 = scalar_lea.vmem [#allocation2], 96
    %v955 = vld [vmem:[%s954] sm:$0xff]
    %v956 = vld [vmem:[%s954 + $0x8] sm:$0xff]
    %v957 = vld [vmem:[%s954 + $0x10] sm:$0xff]
    %v958 = vld [vmem:[%s954 + $0x18] sm:$0xff]
    %959 = vmatprep.subr.mxu0 %v378
    %960 = vmatpush1.msra.mxu0 %v377
    %961 = vmatprep.subr.mxu0 %v382
    %962 = vmatpush1.msra.mxu0 %v381
    %963 = vmatprep.subr.mxu0 %v386
    %964 = vmatpush1.msra.mxu0 %v385
    %965 = vmatprep.subr.mxu0 %v390
    %966 = vmatpush1.msra.mxu0 %v389
    %967 = vmatprep.subr.mxu0 %v394
    %968 = vmatpush1.msra.mxu0 %v393
    %969 = vmatprep.subr.mxu0 %v398
    %970 = vmatpush1.msra.mxu0 %v397
    %971 = vmatprep.subr.mxu0 %v402
    %972 = vmatpush1.msra.mxu0 %v401
    %973 = vmatprep.subr.mxu0 %v406
    %974 = vmatpush1.msra.mxu0 %v405
    %975 = vmatprep.subr.mxu0 %v410
    %976 = vmatpush1.msra.mxu0 %v409
    %977 = vmatprep.subr.mxu0 %v414
    %978 = vmatpush1.msra.mxu0 %v413
    %979 = vmatprep.subr.mxu0 %v418
    %980 = vmatpush1.msra.mxu0 %v417
    %981 = vmatprep.subr.mxu0 %v422
    %982 = vmatpush1.msra.mxu0 %v421
    %983 = vmatprep.subr.mxu0 %v426
    %984 = vmatpush1.msra.mxu0 %v425
    %985 = vmatprep.subr.mxu0 %v430
    %986 = vmatpush1.msra.mxu0 %v429
    %987 = vmatprep.subr.mxu0 %v434
    %988 = vmatpush1.msra.mxu0 %v433
    %989 = vmatprep.subr.mxu0 %v438
    %990 = vmatpush1.msra.mxu0 %v437
    %991 = vmatprep.subr.mxu0 0.0
    %992 = vmatpush1.msra.mxu0 0.0
    %993 = vmatprep.subr.mxu0 0.0
    %994 = vmatpush1.msra.mxu0 0.0
    %995 = vmatprep.subr.mxu0 0.0
    %996 = vmatpush1.msra.mxu0 0.0
    %997 = vmatprep.subr.mxu0 0.0
    %998 = vmatpush1.msra.mxu0 0.0
    %999 = vmatprep.subr.mxu0 0.0
    %1000 = vmatpush1.msra.mxu0 0.0
    %1001 = vmatprep.subr.mxu0 0.0
    %1002 = vmatpush1.msra.mxu0 0.0
    %1003 = vmatprep.subr.mxu0 0.0
    %1004 = vmatpush1.msra.mxu0 0.0
    %1005 = vmatprep.subr.mxu0 0.0
    %1006 = vmatpush1.msra.mxu0 0.0
    %1007 = vmatprep.subr.mxu0 0.0
    %1008 = vmatpush1.msra.mxu0 0.0
    %1009 = vmatprep.subr.mxu0 0.0
    %1010 = vmatpush1.msra.mxu0 0.0
    %1011 = vmatprep.subr.mxu0 0.0
    %1012 = vmatpush1.msra.mxu0 0.0
    %1013 = vmatprep.subr.mxu0 0.0
    %1014 = vmatpush1.msra.mxu0 0.0
    %1015 = vmatprep.subr.mxu0 0.0
    %1016 = vmatpush1.msra.mxu0 0.0
    %1017 = vmatprep.subr.mxu0 0.0
    %1018 = vmatpush1.msra.mxu0 0.0
    %1019 = vmatprep.subr.mxu0 0.0
    %1020 = vmatpush1.msra.mxu0 0.0
    %1021 = vmatprep.subr.mxu0 0.0
    %1022 = vmatpush1.msra.mxu0 0.0
    %1023 = vmatprep.mubr.f32.mxu0 0.0
    %1024 = vmatmul.mubr.f32.gmra.mrb[0].mxu0 %v951
    %v1025 = vpop.f32.mrb[0].mxu0
    %v1026 = vadd.f32 0.0, %v1025
    %v1027 = vpop.f32.mrb[0].mxu0
    %v1028 = vadd.f32 0.0, %v1027
    %1029 = vdwg.mxu0
    %1030 = vmatprep.subr.mxu0 %v380
    %1031 = vmatpush1.msra.mxu0 %v379
    %1032 = vmatprep.subr.mxu0 %v384
    %1033 = vmatpush1.msra.mxu0 %v383
    %1034 = vmatprep.subr.mxu0 %v388
    %1035 = vmatpush1.msra.mxu0 %v387
    %1036 = vmatprep.subr.mxu0 %v392
    %1037 = vmatpush1.msra.mxu0 %v391
    %1038 = vmatprep.subr.mxu0 %v396
    %1039 = vmatpush1.msra.mxu0 %v395
    %1040 = vmatprep.subr.mxu0 %v400
    %1041 = vmatpush1.msra.mxu0 %v399
    %1042 = vmatprep.subr.mxu0 %v404
    %1043 = vmatpush1.msra.mxu0 %v403
    %1044 = vmatprep.subr.mxu0 %v408
    %1045 = vmatpush1.msra.mxu0 %v407
    %1046 = vmatprep.subr.mxu0 %v412
    %1047 = vmatpush1.msra.mxu0 %v411
    %1048 = vmatprep.subr.mxu0 %v416
    %1049 = vmatpush1.msra.mxu0 %v415
    %1050 = vmatprep.subr.mxu0 %v420
    %1051 = vmatpush1.msra.mxu0 %v419
    %1052 = vmatprep.subr.mxu0 %v424
    %1053 = vmatpush1.msra.mxu0 %v423
    %1054 = vmatprep.subr.mxu0 %v428
    %1055 = vmatpush1.msra.mxu0 %v427
    %1056 = vmatprep.subr.mxu0 %v432
    %1057 = vmatpush1.msra.mxu0 %v431
    %1058 = vmatprep.subr.mxu0 %v436
    %1059 = vmatpush1.msra.mxu0 %v435
    %1060 = vmatprep.subr.mxu0 %v440
    %1061 = vmatpush1.msra.mxu0 %v439
    %1062 = vmatprep.subr.mxu0 0.0
    %1063 = vmatpush1.msra.mxu0 0.0
    %1064 = vmatprep.subr.mxu0 0.0
    %1065 = vmatpush1.msra.mxu0 0.0
    %1066 = vmatprep.subr.mxu0 0.0
    %1067 = vmatpush1.msra.mxu0 0.0
    %1068 = vmatprep.subr.mxu0 0.0
    %1069 = vmatpush1.msra.mxu0 0.0
    %1070 = vmatprep.subr.mxu0 0.0
    %1071 = vmatpush1.msra.mxu0 0.0
    %1072 = vmatprep.subr.mxu0 0.0
    %1073 = vmatpush1.msra.mxu0 0.0
    %1074 = vmatprep.subr.mxu0 0.0
    %1075 = vmatpush1.msra.mxu0 0.0
    %1076 = vmatprep.subr.mxu0 0.0
    %1077 = vmatpush1.msra.mxu0 0.0
    %1078 = vmatprep.subr.mxu0 0.0
    %1079 = vmatpush1.msra.mxu0 0.0
    %1080 = vmatprep.subr.mxu0 0.0
    %1081 = vmatpush1.msra.mxu0 0.0
    %1082 = vmatprep.subr.mxu0 0.0
    %1083 = vmatpush1.msra.mxu0 0.0
    %1084 = vmatprep.subr.mxu0 0.0
    %1085 = vmatpush1.msra.mxu0 0.0
    %1086 = vmatprep.subr.mxu0 0.0
    %1087 = vmatpush1.msra.mxu0 0.0
    %1088 = vmatprep.subr.mxu0 0.0
    %1089 = vmatpush1.msra.mxu0 0.0
    %1090 = vmatprep.subr.mxu0 0.0
    %1091 = vmatpush1.msra.mxu0 0.0
    %1092 = vmatprep.subr.mxu0 0.0
    %1093 = vmatpush1.msra.mxu0 0.0
    %1094 = vmatprep.mubr.f32.mxu0 0.0
    %1095 = vmatmul.mubr.f32.gmra.mrb[0].mxu0 %v951
    %v1096 = vpop.f32.mrb[0].mxu0
    %v1097 = vadd.f32 0.0, %v1096
    %v1098 = vpop.f32.mrb[0].mxu0
    %v1099 = vadd.f32 0.0, %v1098
    %1100 = vdwg.mxu0
    %v1101 = vadd.f32 %v955, %v1026
    %v1102 = vadd.f32 %v956, %v1028
    %v1103 = vadd.f32 %v957, %v1097
    %v1104 = vadd.f32 %v958, %v1099
    %v1105 = vmul.f32 %v1101, 0.5
    %v1106 = vtanh.pop %v1105
    %v1107 = vadd.f32 %v1106, 1.0
    %v1108 = vmul.f32 %v1107, 0.5
    %v1109 = vmul.f32 %v1102, 0.5
    %v1110 = vtanh.pop %v1109
    %v1111 = vadd.f32 %v1110, 1.0
    %v1112 = vmul.f32 %v1111, 0.5
    %v1113 = vtanh.pop %v1103
    %v1114 = vmul.f32 %v1104, 0.5
    %v1115 = vtanh.pop %v1114
    %v1116 = vadd.f32 %v1115, 1.0
    %v1117 = vmul.f32 %v1116, 0.5
    %v1118 = vmul.f32 %v1112, %v949
    %v1119 = vmul.f32 %v1108, %v1113
    %v1120 = vadd.f32 %v1118, %v1119
    %v1121 = vtanh.pop %v1120
    %v1122 = vmul.f32 %v1117, %v1121
    %s1123 = scalar_lea.vmem [#allocation8], 24
    %1124 = vst [vmem:[%s1123] sm:$0xff] %v1122
    %s1125 = scalar_lea.vmem [#allocation2], 128
    %v1126 = vld [vmem:[%s1125] sm:$0xff]
    %v1127 = vld [vmem:[%s1125 + $0x8] sm:$0xff]
    %v1128 = vld [vmem:[%s1125 + $0x10] sm:$0xff]
    %v1129 = vld [vmem:[%s1125 + $0x18] sm:$0xff]
    %1130 = vmatprep.subr.mxu0 %v378
    %1131 = vmatpush1.msra.mxu0 %v377
    %1132 = vmatprep.subr.mxu0 %v382
    %1133 = vmatpush1.msra.mxu0 %v381
    %1134 = vmatprep.subr.mxu0 %v386
    %1135 = vmatpush1.msra.mxu0 %v385
    %1136 = vmatprep.subr.mxu0 %v390
    %1137 = vmatpush1.msra.mxu0 %v389
    %1138 = vmatprep.subr.mxu0 %v394
    %1139 = vmatpush1.msra.mxu0 %v393
    %1140 = vmatprep.subr.mxu0 %v398
    %1141 = vmatpush1.msra.mxu0 %v397
    %1142 = vmatprep.subr.mxu0 %v402
    %1143 = vmatpush1.msra.mxu0 %v401
    %1144 = vmatprep.subr.mxu0 %v406
    %1145 = vmatpush1.msra.mxu0 %v405
    %1146 = vmatprep.subr.mxu0 %v410
    %1147 = vmatpush1.msra.mxu0 %v409
    %1148 = vmatprep.subr.mxu0 %v414
    %1149 = vmatpush1.msra.mxu0 %v413
    %1150 = vmatprep.subr.mxu0 %v418
    %1151 = vmatpush1.msra.mxu0 %v417
    %1152 = vmatprep.subr.mxu0 %v422
    %1153 = vmatpush1.msra.mxu0 %v421
    %1154 = vmatprep.subr.mxu0 %v426
    %1155 = vmatpush1.msra.mxu0 %v425
    %1156 = vmatprep.subr.mxu0 %v430
    %1157 = vmatpush1.msra.mxu0 %v429
    %1158 = vmatprep.subr.mxu0 %v434
    %1159 = vmatpush1.msra.mxu0 %v433
    %1160 = vmatprep.subr.mxu0 %v438
    %1161 = vmatpush1.msra.mxu0 %v437
    %1162 = vmatprep.subr.mxu0 0.0
    %1163 = vmatpush1.msra.mxu0 0.0
    %1164 = vmatprep.subr.mxu0 0.0
    %1165 = vmatpush1.msra.mxu0 0.0
    %1166 = vmatprep.subr.mxu0 0.0
    %1167 = vmatpush1.msra.mxu0 0.0
    %1168 = vmatprep.subr.mxu0 0.0
    %1169 = vmatpush1.msra.mxu0 0.0
    %1170 = vmatprep.subr.mxu0 0.0
    %1171 = vmatpush1.msra.mxu0 0.0
    %1172 = vmatprep.subr.mxu0 0.0
    %1173 = vmatpush1.msra.mxu0 0.0
    %1174 = vmatprep.subr.mxu0 0.0
    %1175 = vmatpush1.msra.mxu0 0.0
    %1176 = vmatprep.subr.mxu0 0.0
    %1177 = vmatpush1.msra.mxu0 0.0
    %1178 = vmatprep.subr.mxu0 0.0
    %1179 = vmatpush1.msra.mxu0 0.0
    %1180 = vmatprep.subr.mxu0 0.0
    %1181 = vmatpush1.msra.mxu0 0.0
    %1182 = vmatprep.subr.mxu0 0.0
    %1183 = vmatpush1.msra.mxu0 0.0
    %1184 = vmatprep.subr.mxu0 0.0
    %1185 = vmatpush1.msra.mxu0 0.0
    %1186 = vmatprep.subr.mxu0 0.0
    %1187 = vmatpush1.msra.mxu0 0.0
    %1188 = vmatprep.subr.mxu0 0.0
    %1189 = vmatpush1.msra.mxu0 0.0
    %1190 = vmatprep.subr.mxu0 0.0
    %1191 = vmatpush1.msra.mxu0 0.0
    %1192 = vmatprep.subr.mxu0 0.0
    %1193 = vmatpush1.msra.mxu0 0.0
    %1194 = vmatprep.mubr.f32.mxu0 0.0
    %1195 = vmatmul.mubr.f32.gmra.mrb[0].mxu0 %v1122
    %v1196 = vpop.f32.mrb[0].mxu0
    %v1197 = vadd.f32 0.0, %v1196
    %v1198 = vpop.f32.mrb[0].mxu0
    %v1199 = vadd.f32 0.0, %v1198
    %1200 = vdwg.mxu0
    %1201 = vmatprep.subr.mxu0 %v380
    %1202 = vmatpush1.msra.mxu0 %v379
    %1203 = vmatprep.subr.mxu0 %v384
    %1204 = vmatpush1.msra.mxu0 %v383
    %1205 = vmatprep.subr.mxu0 %v388
    %1206 = vmatpush1.msra.mxu0 %v387
    %1207 = vmatprep.subr.mxu0 %v392
    %1208 = vmatpush1.msra.mxu0 %v391
    %1209 = vmatprep.subr.mxu0 %v396
    %1210 = vmatpush1.msra.mxu0 %v395
    %1211 = vmatprep.subr.mxu0 %v400
    %1212 = vmatpush1.msra.mxu0 %v399
    %1213 = vmatprep.subr.mxu0 %v404
    %1214 = vmatpush1.msra.mxu0 %v403
    %1215 = vmatprep.subr.mxu0 %v408
    %1216 = vmatpush1.msra.mxu0 %v407
    %1217 = vmatprep.subr.mxu0 %v412
    %1218 = vmatpush1.msra.mxu0 %v411
    %1219 = vmatprep.subr.mxu0 %v416
    %1220 = vmatpush1.msra.mxu0 %v415
    %1221 = vmatprep.subr.mxu0 %v420
    %1222 = vmatpush1.msra.mxu0 %v419
    %1223 = vmatprep.subr.mxu0 %v424
    %1224 = vmatpush1.msra.mxu0 %v423
    %1225 = vmatprep.subr.mxu0 %v428
    %1226 = vmatpush1.msra.mxu0 %v427
    %1227 = vmatprep.subr.mxu0 %v432
    %1228 = vmatpush1.msra.mxu0 %v431
    %1229 = vmatprep.subr.mxu0 %v436
    %1230 = vmatpush1.msra.mxu0 %v435
    %1231 = vmatprep.subr.mxu0 %v440
    %1232 = vmatpush1.msra.mxu0 %v439
    %1233 = vmatprep.subr.mxu0 0.0
    %1234 = vmatpush1.msra.mxu0 0.0
    %1235 = vmatprep.subr.mxu0 0.0
    %1236 = vmatpush1.msra.mxu0 0.0
    %1237 = vmatprep.subr.mxu0 0.0
    %1238 = vmatpush1.msra.mxu0 0.0
    %1239 = vmatprep.subr.mxu0 0.0
    %1240 = vmatpush1.msra.mxu0 0.0
    %1241 = vmatprep.subr.mxu0 0.0
    %1242 = vmatpush1.msra.mxu0 0.0
    %1243 = vmatprep.subr.mxu0 0.0
    %1244 = vmatpush1.msra.mxu0 0.0
    %1245 = vmatprep.subr.mxu0 0.0
    %1246 = vmatpush1.msra.mxu0 0.0
    %1247 = vmatprep.subr.mxu0 0.0
    %1248 = vmatpush1.msra.mxu0 0.0
    %1249 = vmatprep.subr.mxu0 0.0
    %1250 = vmatpush1.msra.mxu0 0.0
    %1251 = vmatprep.subr.mxu0 0.0
    %1252 = vmatpush1.msra.mxu0 0.0
    %1253 = vmatprep.subr.mxu0 0.0
    %1254 = vmatpush1.msra.mxu0 0.0
    %1255 = vmatprep.subr.mxu0 0.0
    %1256 = vmatpush1.msra.mxu0 0.0
    %1257 = vmatprep.subr.mxu0 0.0
    %1258 = vmatpush1.msra.mxu0 0.0
    %1259 = vmatprep.subr.mxu0 0.0
    %1260 = vmatpush1.msra.mxu0 0.0
    %1261 = vmatprep.subr.mxu0 0.0
    %1262 = vmatpush1.msra.mxu0 0.0
    %1263 = vmatprep.subr.mxu0 0.0
    %1264 = vmatpush1.msra.mxu0 0.0
    %1265 = vmatprep.mubr.f32.mxu0 0.0
    %1266 = vmatmul.mubr.f32.gmra.mrb[0].mxu0 %v1122
    %v1267 = vpop.f32.mrb[0].mxu0
    %v1268 = vadd.f32 0.0, %v1267
    %v1269 = vpop.f32.mrb[0].mxu0
    %v1270 = vadd.f32 0.0, %v1269
    %1271 = vdwg.mxu0
    %v1272 = vadd.f32 %v1126, %v1197
    %v1273 = vadd.f32 %v1127, %v1199
    %v1274 = vadd.f32 %v1128, %v1268
    %v1275 = vadd.f32 %v1129, %v1270
    %v1276 = vmul.f32 %v1272, 0.5
    %v1277 = vtanh.pop %v1276
    %v1278 = vadd.f32 %v1277, 1.0
    %v1279 = vmul.f32 %v1278, 0.5
    %v1280 = vmul.f32 %v1273, 0.5
    %v1281 = vtanh.pop %v1280
    %v1282 = vadd.f32 %v1281, 1.0
    %v1283 = vmul.f32 %v1282, 0.5
    %v1284 = vtanh.pop %v1274
    %v1285 = vmul.f32 %v1275, 0.5
    %v1286 = vtanh.pop %v1285
    %v1287 = vadd.f32 %v1286, 1.0
    %v1288 = vmul.f32 %v1287, 0.5
    %v1289 = vmul.f32 %v1283, %v1120
    %v1290 = vmul.f32 %v1279, %v1284
    %v1291 = vadd.f32 %v1289, %v1290
    %v1292 = vtanh.pop %v1291
    %v1293 = vmul.f32 %v1288, %v1292
    %s1294 = scalar_lea.vmem [#allocation8], 32
    %1295 = vst [vmem:[%s1294] sm:$0xff] %v1293
    %s1296 = scalar_lea.vmem [#allocation2], 160
    %v1297 = vld [vmem:[%s1296] sm:$0xff]
    %v1298 = vld [vmem:[%s1296 + $0x8] sm:$0xff]
    %v1299 = vld [vmem:[%s1296 + $0x10] sm:$0xff]
    %v1300 = vld [vmem:[%s1296 + $0x18] sm:$0xff]
    %1301 = vmatprep.subr.mxu0 %v378
    %1302 = vmatpush1.msra.mxu0 %v377
    %1303 = vmatprep.subr.mxu0 %v382
    %1304 = vmatpush1.msra.mxu0 %v381
    %1305 = vmatprep.subr.mxu0 %v386
    %1306 = vmatpush1.msra.mxu0 %v385
    %1307 = vmatprep.subr.mxu0 %v390
    %1308 = vmatpush1.msra.mxu0 %v389
    %1309 = vmatprep.subr.mxu0 %v394
    %1310 = vmatpush1.msra.mxu0 %v393
    %1311 = vmatprep.subr.mxu0 %v398
    %1312 = vmatpush1.msra.mxu0 %v397
    %1313 = vmatprep.subr.mxu0 %v402
    %1314 = vmatpush1.msra.mxu0 %v401
    %1315 = vmatprep.subr.mxu0 %v406
    %1316 = vmatpush1.msra.mxu0 %v405
    %1317 = vmatprep.subr.mxu0 %v410
    %1318 = vmatpush1.msra.mxu0 %v409
    %1319 = vmatprep.subr.mxu0 %v414
    %1320 = vmatpush1.msra.mxu0 %v413
    %1321 = vmatprep.subr.mxu0 %v418
    %1322 = vmatpush1.msra.mxu0 %v417
    %1323 = vmatprep.subr.mxu0 %v422
    %1324 = vmatpush1.msra.mxu0 %v421
    %1325 = vmatprep.subr.mxu0 %v426
    %1326 = vmatpush1.msra.mxu0 %v425
    %1327 = vmatprep.subr.mxu0 %v430
    %1328 = vmatpush1.msra.mxu0 %v429
    %1329 = vmatprep.subr.mxu0 %v434
    %1330 = vmatpush1.msra.mxu0 %v433
    %1331 = vmatprep.subr.mxu0 %v438
    %1332 = vmatpush1.msra.mxu0 %v437
    %1333 = vmatprep.subr.mxu0 0.0
    %1334 = vmatpush1.msra.mxu0 0.0
    %1335 = vmatprep.subr.mxu0 0.0
    %1336 = vmatpush1.msra.mxu0 0.0
    %1337 = vmatprep.subr.mxu0 0.0
    %1338 = vmatpush1.msra.mxu0 0.0
    %1339 = vmatprep.subr.mxu0 0.0
    %1340 = vmatpush1.msra.mxu0 0.0
    %1341 = vmatprep.subr.mxu0 0.0
    %1342 = vmatpush1.msra.mxu0 0.0
    %1343 = vmatprep.subr.mxu0 0.0
    %1344 = vmatpush1.msra.mxu0 0.0
    %1345 = vmatprep.subr.mxu0 0.0
    %1346 = vmatpush1.msra.mxu0 0.0
    %1347 = vmatprep.subr.mxu0 0.0
    %1348 = vmatpush1.msra.mxu0 0.0
    %1349 = vmatprep.subr.mxu0 0.0
    %1350 = vmatpush1.msra.mxu0 0.0
    %1351 = vmatprep.subr.mxu0 0.0
    %1352 = vmatpush1.msra.mxu0 0.0
    %1353 = vmatprep.subr.mxu0 0.0
    %1354 = vmatpush1.msra.mxu0 0.0
    %1355 = vmatprep.subr.mxu0 0.0
    %1356 = vmatpush1.msra.mxu0 0.0
    %1357 = vmatprep.subr.mxu0 0.0
    %1358 = vmatpush1.msra.mxu0 0.0
    %1359 = vmatprep.subr.mxu0 0.0
    %1360 = vmatpush1.msra.mxu0 0.0
    %1361 = vmatprep.subr.mxu0 0.0
    %1362 = vmatpush1.msra.mxu0 0.0
    %1363 = vmatprep.subr.mxu0 0.0
    %1364 = vmatpush1.msra.mxu0 0.0
    %1365 = vmatprep.mubr.f32.mxu0 0.0
    %1366 = vmatmul.mubr.f32.gmra.mrb[0].mxu0 %v1293
    %v1367 = vpop.f32.mrb[0].mxu0
    %v1368 = vadd.f32 0.0, %v1367
    %v1369 = vpop.f32.mrb[0].mxu0
    %v1370 = vadd.f32 0.0, %v1369
    %1371 = vdwg.mxu0
    %1372 = vmatprep.subr.mxu0 %v380
    %1373 = vmatpush1.msra.mxu0 %v379
    %1374 = vmatprep.subr.mxu0 %v384
    %1375 = vmatpush1.msra.mxu0 %v383
    %1376 = vmatprep.subr.mxu0 %v388
    %1377 = vmatpush1.msra.mxu0 %v387
    %1378 = vmatprep.subr.mxu0 %v392
    %1379 = vmatpush1.msra.mxu0 %v391
    %1380 = vmatprep.subr.mxu0 %v396
    %1381 = vmatpush1.msra.mxu0 %v395
    %1382 = vmatprep.subr.mxu0 %v400
    %1383 = vmatpush1.msra.mxu0 %v399
    %1384 = vmatprep.subr.mxu0 %v404
    %1385 = vmatpush1.msra.mxu0 %v403
    %1386 = vmatprep.subr.mxu0 %v408
    %1387 = vmatpush1.msra.mxu0 %v407
    %1388 = vmatprep.subr.mxu0 %v412
    %1389 = vmatpush1.msra.mxu0 %v411
    %1390 = vmatprep.subr.mxu0 %v416
    %1391 = vmatpush1.msra.mxu0 %v415
    %1392 = vmatprep.subr.mxu0 %v420
    %1393 = vmatpush1.msra.mxu0 %v419
    %1394 = vmatprep.subr.mxu0 %v424
    %1395 = vmatpush1.msra.mxu0 %v423
    %1396 = vmatprep.subr.mxu0 %v428
    %1397 = vmatpush1.msra.mxu0 %v427
    %1398 = vmatprep.subr.mxu0 %v432
    %1399 = vmatpush1.msra.mxu0 %v431
    %1400 = vmatprep.subr.mxu0 %v436
    %1401 = vmatpush1.msra.mxu0 %v435
    %1402 = vmatprep.subr.mxu0 %v440
    %1403 = vmatpush1.msra.mxu0 %v439
    %1404 = vmatprep.subr.mxu0 0.0
    %1405 = vmatpush1.msra.mxu0 0.0
    %1406 = vmatprep.subr.mxu0 0.0
    %1407 = vmatpush1.msra.mxu0 0.0
    %1408 = vmatprep.subr.mxu0 0.0
    %1409 = vmatpush1.msra.mxu0 0.0
    %1410 = vmatprep.subr.mxu0 0.0
    %1411 = vmatpush1.msra.mxu0 0.0
    %1412 = vmatprep.subr.mxu0 0.0
    %1413 = vmatpush1.msra.mxu0 0.0
    %1414 = vmatprep.subr.mxu0 0.0
    %1415 = vmatpush1.msra.mxu0 0.0
    %1416 = vmatprep.subr.mxu0 0.0
    %1417 = vmatpush1.msra.mxu0 0.0
    %1418 = vmatprep.subr.mxu0 0.0
    %1419 = vmatpush1.msra.mxu0 0.0
    %1420 = vmatprep.subr.mxu0 0.0
    %1421 = vmatpush1.msra.mxu0 0.0
    %1422 = vmatprep.subr.mxu0 0.0
    %1423 = vmatpush1.msra.mxu0 0.0
    %1424 = vmatprep.subr.mxu0 0.0
    %1425 = vmatpush1.msra.mxu0 0.0
    %1426 = vmatprep.subr.mxu0 0.0
    %1427 = vmatpush1.msra.mxu0 0.0
    %1428 = vmatprep.subr.mxu0 0.0
    %1429 = vmatpush1.msra.mxu0 0.0
    %1430 = vmatprep.subr.mxu0 0.0
    %1431 = vmatpush1.msra.mxu0 0.0
    %1432 = vmatprep.subr.mxu0 0.0
    %1433 = vmatpush1.msra.mxu0 0.0
    %1434 = vmatprep.subr.mxu0 0.0
    %1435 = vmatpush1.msra.mxu0 0.0
    %1436 = vmatprep.mubr.f32.mxu0 0.0
    %1437 = vmatmul.mubr.f32.gmra.mrb[0].mxu0 %v1293
    %v1438 = vpop.f32.mrb[0].mxu0
    %v1439 = vadd.f32 0.0, %v1438
    %v1440 = vpop.f32.mrb[0].mxu0
    %v1441 = vadd.f32 0.0, %v1440
    %1442 = vdwg.mxu0
    %v1443 = vadd.f32 %v1297, %v1368
    %v1444 = vadd.f32 %v1298, %v1370
    %v1445 = vadd.f32 %v1299, %v1439
    %v1446 = vadd.f32 %v1300, %v1441
    %v1447 = vmul.f32 %v1443, 0.5
    %v1448 = vtanh.pop %v1447
    %v1449 = vadd.f32 %v1448, 1.0
    %v1450 = vmul.f32 %v1449, 0.5
    %v1451 = vmul.f32 %v1444, 0.5
    %v1452 = vtanh.pop %v1451
    %v1453 = vadd.f32 %v1452, 1.0
    %v1454 = vmul.f32 %v1453, 0.5
    %v1455 = vtanh.pop %v1445
    %v1456 = vmul.f32 %v1446, 0.5
    %v1457 = vtanh.pop %v1456
    %v1458 = vadd.f32 %v1457, 1.0
    %v1459 = vmul.f32 %v1458, 0.5
    %v1460 = vmul.f32 %v1454, %v1291
    %v1461 = vmul.f32 %v1450, %v1455
    %v1462 = vadd.f32 %v1460, %v1461
    %v1463 = vtanh.pop %v1462
    %v1464 = vmul.f32 %v1459, %v1463
    %s1465 = scalar_lea.vmem [#allocation8], 40
    %1466 = vst [vmem:[%s1465] sm:$0xff] %v1464
    %s1467 = scalar_lea.vmem [#allocation2], 192
    %v1468 = vld [vmem:[%s1467] sm:$0xff]
    %v1469 = vld [vmem:[%s1467 + $0x8] sm:$0xff]
    %v1470 = vld [vmem:[%s1467 + $0x10] sm:$0xff]
    %v1471 = vld [vmem:[%s1467 + $0x18] sm:$0xff]
    %1472 = vmatprep.subr.mxu0 %v378
    %1473 = vmatpush1.msra.mxu0 %v377
    %1474 = vmatprep.subr.mxu0 %v382
    %1475 = vmatpush1.msra.mxu0 %v381
    %1476 = vmatprep.subr.mxu0 %v386
    %1477 = vmatpush1.msra.mxu0 %v385
    %1478 = vmatprep.subr.mxu0 %v390
    %1479 = vmatpush1.msra.mxu0 %v389
    %1480 = vmatprep.subr.mxu0 %v394
    %1481 = vmatpush1.msra.mxu0 %v393
    %1482 = vmatprep.subr.mxu0 %v398
    %1483 = vmatpush1.msra.mxu0 %v397
    %1484 = vmatprep.subr.mxu0 %v402
    %1485 = vmatpush1.msra.mxu0 %v401
    %1486 = vmatprep.subr.mxu0 %v406
    %1487 = vmatpush1.msra.mxu0 %v405
    %1488 = vmatprep.subr.mxu0 %v410
    %1489 = vmatpush1.msra.mxu0 %v409
    %1490 = vmatprep.subr.mxu0 %v414
    %1491 = vmatpush1.msra.mxu0 %v413
    %1492 = vmatprep.subr.mxu0 %v418
    %1493 = vmatpush1.msra.mxu0 %v417
    %1494 = vmatprep.subr.mxu0 %v422
    %1495 = vmatpush1.msra.mxu0 %v421
    %1496 = vmatprep.subr.mxu0 %v426
    %1497 = vmatpush1.msra.mxu0 %v425
    %1498 = vmatprep.subr.mxu0 %v430
    %1499 = vmatpush1.msra.mxu0 %v429
    %1500 = vmatprep.subr.mxu0 %v434
    %1501 = vmatpush1.msra.mxu0 %v433
    %1502 = vmatprep.subr.mxu0 %v438
    %1503 = vmatpush1.msra.mxu0 %v437
    %1504 = vmatprep.subr.mxu0 0.0
    %1505 = vmatpush1.msra.mxu0 0.0
    %1506 = vmatprep.subr.mxu0 0.0
    %1507 = vmatpush1.msra.mxu0 0.0
    %1508 = vmatprep.subr.mxu0 0.0
    %1509 = vmatpush1.msra.mxu0 0.0
    %1510 = vmatprep.subr.mxu0 0.0
    %1511 = vmatpush1.msra.mxu0 0.0
    %1512 = vmatprep.subr.mxu0 0.0
    %1513 = vmatpush1.msra.mxu0 0.0
    %1514 = vmatprep.subr.mxu0 0.0
    %1515 = vmatpush1.msra.mxu0 0.0
    %1516 = vmatprep.subr.mxu0 0.0
    %1517 = vmatpush1.msra.mxu0 0.0
    %1518 = vmatprep.subr.mxu0 0.0
    %1519 = vmatpush1.msra.mxu0 0.0
    %1520 = vmatprep.subr.mxu0 0.0
    %1521 = vmatpush1.msra.mxu0 0.0
    %1522 = vmatprep.subr.mxu0 0.0
    %1523 = vmatpush1.msra.mxu0 0.0
    %1524 = vmatprep.subr.mxu0 0.0
    %1525 = vmatpush1.msra.mxu0 0.0
    %1526 = vmatprep.subr.mxu0 0.0
    %1527 = vmatpush1.msra.mxu0 0.0
    %1528 = vmatprep.subr.mxu0 0.0
    %1529 = vmatpush1.msra.mxu0 0.0
    %1530 = vmatprep.subr.mxu0 0.0
    %1531 = vmatpush1.msra.mxu0 0.0
    %1532 = vmatprep.subr.mxu0 0.0
    %1533 = vmatpush1.msra.mxu0 0.0
    %1534 = vmatprep.subr.mxu0 0.0
    %1535 = vmatpush1.msra.mxu0 0.0
    %1536 = vmatprep.mubr.f32.mxu0 0.0
    %1537 = vmatmul.mubr.f32.gmra.mrb[0].mxu0 %v1464
    %v1538 = vpop.f32.mrb[0].mxu0
    %v1539 = vadd.f32 0.0, %v1538
    %v1540 = vpop.f32.mrb[0].mxu0
    %v1541 = vadd.f32 0.0, %v1540
    %1542 = vdwg.mxu0
    %1543 = vmatprep.subr.mxu0 %v380
    %1544 = vmatpush1.msra.mxu0 %v379
    %1545 = vmatprep.subr.mxu0 %v384
    %1546 = vmatpush1.msra.mxu0 %v383
    %1547 = vmatprep.subr.mxu0 %v388
    %1548 = vmatpush1.msra.mxu0 %v387
    %1549 = vmatprep.subr.mxu0 %v392
    %1550 = vmatpush1.msra.mxu0 %v391
    %1551 = vmatprep.subr.mxu0 %v396
    %1552 = vmatpush1.msra.mxu0 %v395
    %1553 = vmatprep.subr.mxu0 %v400
    %1554 = vmatpush1.msra.mxu0 %v399
    %1555 = vmatprep.subr.mxu0 %v404
    %1556 = vmatpush1.msra.mxu0 %v403
    %1557 = vmatprep.subr.mxu0 %v408
    %1558 = vmatpush1.msra.mxu0 %v407
    %1559 = vmatprep.subr.mxu0 %v412
    %1560 = vmatpush1.msra.mxu0 %v411
    %1561 = vmatprep.subr.mxu0 %v416
    %1562 = vmatpush1.msra.mxu0 %v415
    %1563 = vmatprep.subr.mxu0 %v420
    %1564 = vmatpush1.msra.mxu0 %v419
    %1565 = vmatprep.subr.mxu0 %v424
    %1566 = vmatpush1.msra.mxu0 %v423
    %1567 = vmatprep.subr.mxu0 %v428
    %1568 = vmatpush1.msra.mxu0 %v427
    %1569 = vmatprep.subr.mxu0 %v432
    %1570 = vmatpush1.msra.mxu0 %v431
    %1571 = vmatprep.subr.mxu0 %v436
    %1572 = vmatpush1.msra.mxu0 %v435
    %1573 = vmatprep.subr.mxu0 %v440
    %1574 = vmatpush1.msra.mxu0 %v439
    %1575 = vmatprep.subr.mxu0 0.0
    %1576 = vmatpush1.msra.mxu0 0.0
    %1577 = vmatprep.subr.mxu0 0.0
    %1578 = vmatpush1.msra.mxu0 0.0
    %1579 = vmatprep.subr.mxu0 0.0
    %1580 = vmatpush1.msra.mxu0 0.0
    %1581 = vmatprep.subr.mxu0 0.0
    %1582 = vmatpush1.msra.mxu0 0.0
    %1583 = vmatprep.subr.mxu0 0.0
    %1584 = vmatpush1.msra.mxu0 0.0
    %1585 = vmatprep.subr.mxu0 0.0
    %1586 = vmatpush1.msra.mxu0 0.0
    %1587 = vmatprep.subr.mxu0 0.0
    %1588 = vmatpush1.msra.mxu0 0.0
    %1589 = vmatprep.subr.mxu0 0.0
    %1590 = vmatpush1.msra.mxu0 0.0
    %1591 = vmatprep.subr.mxu0 0.0
    %1592 = vmatpush1.msra.mxu0 0.0
    %1593 = vmatprep.subr.mxu0 0.0
    %1594 = vmatpush1.msra.mxu0 0.0
    %1595 = vmatprep.subr.mxu0 0.0
    %1596 = vmatpush1.msra.mxu0 0.0
    %1597 = vmatprep.subr.mxu0 0.0
    %1598 = vmatpush1.msra.mxu0 0.0
    %1599 = vmatprep.subr.mxu0 0.0
    %1600 = vmatpush1.msra.mxu0 0.0
    %1601 = vmatprep.subr.mxu0 0.0
    %1602 = vmatpush1.msra.mxu0 0.0
    %1603 = vmatprep.subr.mxu0 0.0
    %1604 = vmatpush1.msra.mxu0 0.0
    %1605 = vmatprep.subr.mxu0 0.0
    %1606 = vmatpush1.msra.mxu0 0.0
    %1607 = vmatprep.mubr.f32.mxu0 0.0
    %1608 = vmatmul.mubr.f32.gmra.mrb[0].mxu0 %v1464
    %v1609 = vpop.f32.mrb[0].mxu0
    %v1610 = vadd.f32 0.0, %v1609
    %v1611 = vpop.f32.mrb[0].mxu0
    %v1612 = vadd.f32 0.0, %v1611
    %1613 = vdwg.mxu0
    %v1614 = vadd.f32 %v1468, %v1539
    %v1615 = vadd.f32 %v1469, %v1541
    %v1616 = vadd.f32 %v1470, %v1610
    %v1617 = vadd.f32 %v1471, %v1612
    %v1618 = vmul.f32 %v1614, 0.5
    %v1619 = vtanh.pop %v1618
    %v1620 = vadd.f32 %v1619, 1.0
    %v1621 = vmul.f32 %v1620, 0.5
    %v1622 = vmul.f32 %v1615, 0.5
    %v1623 = vtanh.pop %v1622
    %v1624 = vadd.f32 %v1623, 1.0
    %v1625 = vmul.f32 %v1624, 0.5
    %v1626 = vtanh.pop %v1616
    %v1627 = vmul.f32 %v1617, 0.5
    %v1628 = vtanh.pop %v1627
    %v1629 = vadd.f32 %v1628, 1.0
    %v1630 = vmul.f32 %v1629, 0.5
    %v1631 = vmul.f32 %v1625, %v1462
    %v1632 = vmul.f32 %v1621, %v1626
    %v1633 = vadd.f32 %v1631, %v1632
    %v1634 = vtanh.pop %v1633
    %v1635 = vmul.f32 %v1630, %v1634
    %s1636 = scalar_lea.vmem [#allocation8], 48
    %1637 = vst [vmem:[%s1636] sm:$0xff] %v1635
    %s1638 = scalar_lea.vmem [#allocation2], 224
    %v1639 = vld [vmem:[%s1638] sm:$0xff]
    %v1640 = vld [vmem:[%s1638 + $0x8] sm:$0xff]
    %v1641 = vld [vmem:[%s1638 + $0x10] sm:$0xff]
    %v1642 = vld [vmem:[%s1638 + $0x18] sm:$0xff]
    %1643 = vmatprep.subr.mxu0 %v378
    %1644 = vmatpush1.msra.mxu0 %v377
    %1645 = vmatprep.subr.mxu0 %v382
    %1646 = vmatpush1.msra.mxu0 %v381
    %1647 = vmatprep.subr.mxu0 %v386
    %1648 = vmatpush1.msra.mxu0 %v385
    %1649 = vmatprep.subr.mxu0 %v390
    %1650 = vmatpush1.msra.mxu0 %v389
    %1651 = vmatprep.subr.mxu0 %v394
    %1652 = vmatpush1.msra.mxu0 %v393
    %1653 = vmatprep.subr.mxu0 %v398
    %1654 = vmatpush1.msra.mxu0 %v397
    %1655 = vmatprep.subr.mxu0 %v402
    %1656 = vmatpush1.msra.mxu0 %v401
    %1657 = vmatprep.subr.mxu0 %v406
    %1658 = vmatpush1.msra.mxu0 %v405
    %1659 = vmatprep.subr.mxu0 %v410
    %1660 = vmatpush1.msra.mxu0 %v409
    %1661 = vmatprep.subr.mxu0 %v414
    %1662 = vmatpush1.msra.mxu0 %v413
    %1663 = vmatprep.subr.mxu0 %v418
    %1664 = vmatpush1.msra.mxu0 %v417
    %1665 = vmatprep.subr.mxu0 %v422
    %1666 = vmatpush1.msra.mxu0 %v421
    %1667 = vmatprep.subr.mxu0 %v426
    %1668 = vmatpush1.msra.mxu0 %v425
    %1669 = vmatprep.subr.mxu0 %v430
    %1670 = vmatpush1.msra.mxu0 %v429
    %1671 = vmatprep.subr.mxu0 %v434
    %1672 = vmatpush1.msra.mxu0 %v433
    %1673 = vmatprep.subr.mxu0 %v438
    %1674 = vmatpush1.msra.mxu0 %v437
    %1675 = vmatprep.subr.mxu0 0.0
    %1676 = vmatpush1.msra.mxu0 0.0
    %1677 = vmatprep.subr.mxu0 0.0
    %1678 = vmatpush1.msra.mxu0 0.0
    %1679 = vmatprep.subr.mxu0 0.0
    %1680 = vmatpush1.msra.mxu0 0.0
    %1681 = vmatprep.subr.mxu0 0.0
    %1682 = vmatpush1.msra.mxu0 0.0
    %1683 = vmatprep.subr.mxu0 0.0
    %1684 = vmatpush1.msra.mxu0 0.0
    %1685 = vmatprep.subr.mxu0 0.0
    %1686 = vmatpush1.msra.mxu0 0.0
    %1687 = vmatprep.subr.mxu0 0.0
    %1688 = vmatpush1.msra.mxu0 0.0
    %1689 = vmatprep.subr.mxu0 0.0
    %1690 = vmatpush1.msra.mxu0 0.0
    %1691 = vmatprep.subr.mxu0 0.0
    %1692 = vmatpush1.msra.mxu0 0.0
    %1693 = vmatprep.subr.mxu0 0.0
    %1694 = vmatpush1.msra.mxu0 0.0
    %1695 = vmatprep.subr.mxu0 0.0
    %1696 = vmatpush1.msra.mxu0 0.0
    %1697 = vmatprep.subr.mxu0 0.0
    %1698 = vmatpush1.msra.mxu0 0.0
    %1699 = vmatprep.subr.mxu0 0.0
    %1700 = vmatpush1.msra.mxu0 0.0
    %1701 = vmatprep.subr.mxu0 0.0
    %1702 = vmatpush1.msra.mxu0 0.0
    %1703 = vmatprep.subr.mxu0 0.0
    %1704 = vmatpush1.msra.mxu0 0.0
    %1705 = vmatprep.subr.mxu0 0.0
    %1706 = vmatpush1.msra.mxu0 0.0
    %1707 = vmatprep.mubr.f32.mxu0 0.0
    %1708 = vmatmul.mubr.f32.gmra.mrb[0].mxu0 %v1635
    %v1709 = vpop.f32.mrb[0].mxu0
    %v1710 = vadd.f32 0.0, %v1709
    %v1711 = vpop.f32.mrb[0].mxu0
    %v1712 = vadd.f32 0.0, %v1711
    %1713 = vdwg.mxu0
    %1714 = vmatprep.subr.mxu0 %v380
    %1715 = vmatpush1.msra.mxu0 %v379
    %1716 = vmatprep.subr.mxu0 %v384
    %1717 = vmatpush1.msra.mxu0 %v383
    %1718 = vmatprep.subr.mxu0 %v388
    %1719 = vmatpush1.msra.mxu0 %v387
    %1720 = vmatprep.subr.mxu0 %v392
    %1721 = vmatpush1.msra.mxu0 %v391
    %1722 = vmatprep.subr.mxu0 %v396
    %1723 = vmatpush1.msra.mxu0 %v395
    %1724 = vmatprep.subr.mxu0 %v400
    %1725 = vmatpush1.msra.mxu0 %v399
    %1726 = vmatprep.subr.mxu0 %v404
    %1727 = vmatpush1.msra.mxu0 %v403
    %1728 = vmatprep.subr.mxu0 %v408
    %1729 = vmatpush1.msra.mxu0 %v407
    %1730 = vmatprep.subr.mxu0 %v412
    %1731 = vmatpush1.msra.mxu0 %v411
    %1732 = vmatprep.subr.mxu0 %v416
    %1733 = vmatpush1.msra.mxu0 %v415
    %1734 = vmatprep.subr.mxu0 %v420
    %1735 = vmatpush1.msra.mxu0 %v419
    %1736 = vmatprep.subr.mxu0 %v424
    %1737 = vmatpush1.msra.mxu0 %v423
    %1738 = vmatprep.subr.mxu0 %v428
    %1739 = vmatpush1.msra.mxu0 %v427
    %1740 = vmatprep.subr.mxu0 %v432
    %1741 = vmatpush1.msra.mxu0 %v431
    %1742 = vmatprep.subr.mxu0 %v436
    %1743 = vmatpush1.msra.mxu0 %v435
    %1744 = vmatprep.subr.mxu0 %v440
    %1745 = vmatpush1.msra.mxu0 %v439
    %1746 = vmatprep.subr.mxu0 0.0
    %1747 = vmatpush1.msra.mxu0 0.0
    %1748 = vmatprep.subr.mxu0 0.0
    %1749 = vmatpush1.msra.mxu0 0.0
    %1750 = vmatprep.subr.mxu0 0.0
    %1751 = vmatpush1.msra.mxu0 0.0
    %1752 = vmatprep.subr.mxu0 0.0
    %1753 = vmatpush1.msra.mxu0 0.0
    %1754 = vmatprep.subr.mxu0 0.0
    %1755 = vmatpush1.msra.mxu0 0.0
    %1756 = vmatprep.subr.mxu0 0.0
    %1757 = vmatpush1.msra.mxu0 0.0
    %1758 = vmatprep.subr.mxu0 0.0
    %1759 = vmatpush1.msra.mxu0 0.0
    %1760 = vmatprep.subr.mxu0 0.0
    %1761 = vmatpush1.msra.mxu0 0.0
    %1762 = vmatprep.subr.mxu0 0.0
    %1763 = vmatpush1.msra.mxu0 0.0
    %1764 = vmatprep.subr.mxu0 0.0
    %1765 = vmatpush1.msra.mxu0 0.0
    %1766 = vmatprep.subr.mxu0 0.0
    %1767 = vmatpush1.msra.mxu0 0.0
    %1768 = vmatprep.subr.mxu0 0.0
    %1769 = vmatpush1.msra.mxu0 0.0
    %1770 = vmatprep.subr.mxu0 0.0
    %1771 = vmatpush1.msra.mxu0 0.0
    %1772 = vmatprep.subr.mxu0 0.0
    %1773 = vmatpush1.msra.mxu0 0.0
    %1774 = vmatprep.subr.mxu0 0.0
    %1775 = vmatpush1.msra.mxu0 0.0
    %1776 = vmatprep.subr.mxu0 0.0
    %1777 = vmatpush1.msra.mxu0 0.0
    %1778 = vmatprep.mubr.f32.mxu0 0.0
    %1779 = vmatmul.mubr.f32.gmra.mrb[0].mxu0 %v1635
    %v1780 = vpop.f32.mrb[0].mxu0
    %v1781 = vadd.f32 0.0, %v1780
    %v1782 = vpop.f32.mrb[0].mxu0
    %v1783 = vadd.f32 0.0, %v1782
    %1784 = vdwg.mxu0
    %v1785 = vadd.f32 %v1639, %v1710
    %v1786 = vadd.f32 %v1640, %v1712
    %v1787 = vadd.f32 %v1641, %v1781
    %v1788 = vadd.f32 %v1642, %v1783
    %v1789 = vmul.f32 %v1785, 0.5
    %v1790 = vtanh.pop %v1789
    %v1791 = vadd.f32 %v1790, 1.0
    %v1792 = vmul.f32 %v1791, 0.5
    %v1793 = vmul.f32 %v1786, 0.5
    %v1794 = vtanh.pop %v1793
    %v1795 = vadd.f32 %v1794, 1.0
    %v1796 = vmul.f32 %v1795, 0.5
    %v1797 = vtanh.pop %v1787
    %v1798 = vmul.f32 %v1788, 0.5
    %v1799 = vtanh.pop %v1798
    %v1800 = vadd.f32 %v1799, 1.0
    %v1801 = vmul.f32 %v1800, 0.5
    %v1802 = vmul.f32 %v1796, %v1633
    %v1803 = vmul.f32 %v1792, %v1797
    %v1804 = vadd.f32 %v1802, %v1803
    %v1805 = vtanh.pop %v1804
    %v1806 = vmul.f32 %v1801, %v1805
    %s1807 = scalar_lea.vmem [#allocation8], 56
    %1808 = vst [vmem:[%s1807] sm:$0xff] %v1806
    %1809 = vst [vmem:[#allocation3] sm:$0xff] %v1806
    %1810 = vst [vmem:[#allocation4] sm:$0xff] %v1804
    // Predicated region
    $region34: #{tpu_custom_call.1} parent=1 // pred_check
      %p1811 = pneg %p41
    $region35: #{tpu_custom_call.1} parent=1 // pred_check_branch
      %1813 = sbr.rel (%p1811) target = $region37
    $region36: #{tpu_custom_call.1} parent=1 // pred_region
      %1814 = vst [vmem:[#allocation9] sm:$0xff] %v1804
    $region37: #{tpu_custom_call.1} parent=1 // pred_fallthru
      _
    // Predicated region
    $region38: #{tpu_custom_call.1} parent=1 // pred_check
      _
    $region39: #{tpu_custom_call.1} parent=1 // pred_check_branch
      %1816 = sbr.rel (0) target = $region41
    $region40: #{tpu_custom_call.1} parent=1 // pred_region
      %s1818 = ssub.s32 1024, 1024
      %1819 = vsyncadd [#allocation7], %s1818
      %s1820 = sshll.u32 [#allocation8], 4
      %s1821 = int_to_ptr.vmem [resolvable:$true] %s1820
      %1826 = dma.vmem_to_hbm [thread:$0]  %s1821, 1024, %s6, [#allocation7], 128, 128, 8
    $region41: #{tpu_custom_call.1} parent=1 // pred_fallthru
      _
    // Predicated region
    $region42: #{tpu_custom_call.1} parent=1 // pred_check
      _
    $region43: #{tpu_custom_call.1} parent=1 // pred_check_branch
      %1828 = sbr.rel (0) target = $region45
    $region44: #{tpu_custom_call.1} parent=1 // pred_region
      %s1830 = ssub.s32 128, 128
      %1831 = vsyncadd [#allocation10], %s1830
      %s1833 = sshll.u32 [#allocation9], 4
      %s1834 = int_to_ptr.vmem [resolvable:$true] %s1833
      %1836 = dma.vmem_to_hbm [thread:$0]  %s1834, 128, %s7, [#allocation10]
    $region45: #{tpu_custom_call.1} parent=1 // pred_fallthru
      _
    // Predicated region
    $region46: #{tpu_custom_call.1} parent=1 // pred_check
      _
    $region47: #{tpu_custom_call.1} parent=1 // pred_check_branch
      %1838 = sbr.rel (0) target = $region49
    $region48: #{tpu_custom_call.1} parent=1 // pred_region
      %1839 = dma.done [#allocation7], 1024
    $region49: #{tpu_custom_call.1} parent=1 // pred_fallthru
      _
    // Predicated region
    $region50: #{tpu_custom_call.1} parent=1 // pred_check
      _
    $region51: #{tpu_custom_call.1} parent=1 // pred_check_branch
      %1841 = sbr.rel (0) target = $region53
    $region52: #{tpu_custom_call.1} parent=1 // pred_region
      %1842 = dma.done [#allocation10], 128
    $region53: #{tpu_custom_call.1} parent=1 // pred_fallthru
      _
    %1843 = vsyncpa [#allocation6], 1
    %1844 = vsyncpa [#allocation7], 1
    %1845 = vsyncpa [#allocation10], 1

</llo_original>
